<compile_context>
chip_gen: v7x
topology: tpu7x:2x2x1
jax: 0.10.0
libtpu: 0.0.40
codegen_flags: <defaults>
</compile_context>

<pallas_src>
import numpy as np
import jax
import jax.numpy as jnp
from jax.experimental import pallas as pl
from jax.experimental.pallas import tpu as pltpu


# ----------------------------------------------------------------------------
# Host-side topology helpers (mirrors TreeLSTMPool.topologically_sorted)
# ----------------------------------------------------------------------------
def topo_levels(adj: np.ndarray):
    """Topological levels (leaves first); each entry is an array of node ids
    that can be processed in parallel."""
    degrees = adj.sum(axis=1).astype(np.int64)
    accumulator = np.zeros_like(degrees)
    active = (accumulator == degrees).astype(np.int64)
    degrees = degrees - active
    levels = []
    while active.any():
        levels.append(np.where(active.astype(bool))[0].astype(np.int32))
        accumulator = accumulator + adj @ active
        active = (accumulator == degrees).astype(np.int64)
        accumulator = accumulator - active
    return levels


def _round_up(v: int, m: int) -> int:
    return ((v + m - 1) // m) * m


# ----------------------------------------------------------------------------
# Pallas kernel: one topological level per grid step.
# ----------------------------------------------------------------------------
def _tree_lstm_level_kernel(x_ref, cs_ref, sc_ref,             # per-level blocks
                            wall_ref, uiou_ref, uf_ref, ball_ref,   # weights
                            h_ref):                            # resident output H
    lvl = pl.program_id(0)
    h_pad = h_ref.shape[1]
    l_pad = x_ref.shape[1]
    n_child = cs_ref.shape[1] // l_pad          # static max children per node

    @pl.when(lvl == 0)
    def _():
        h_ref[...] = jnp.zeros_like(h_ref)

    H = h_ref[...]          # (n_pad, h_pad)   hidden-state table (VMEM resident)
    xl = x_ref[0]           # (l_pad, x_pad)   node features of this level
    cs = cs_ref[0]          # (C*l_pad, n_pad) per-child-slot selectors
    sc = sc_ref[0]          # (n_pad, l_pad)   scatter selectors (one-hot cols)

    # Gather hidden states of all children; slot (c, p) lives at row c*l_pad+p.
    h_child = jnp.dot(cs, H, preferred_element_type=jnp.float32)   # (C*l, h)

    # Child-sum, one row per level node (padding slots are zero rows).
    h_sum = h_child[0:l_pad]
    for c in range(1, n_child):
        h_sum = h_sum + h_child[c * l_pad:(c + 1) * l_pad]         # (l, h)

    # Fused input projection: gates packed along lanes as [i | o | u | f],
    # each on its own 128-lane boundary -> aligned, unmasked slices.
    iouf = jnp.dot(xl, wall_ref[...], preferred_element_type=jnp.float32) \
        + ball_ref[...]                                            # (l, 4h)
    iou_h = jnp.dot(h_sum, uiou_ref[...],
                    preferred_element_type=jnp.float32)            # (l, 3h)

    i_g = jax.nn.sigmoid(iouf[:, 0:h_pad] + iou_h[:, 0:h_pad])
    o_g = jax.nn.sigmoid(iouf[:, h_pad:2 * h_pad] + iou_h[:, h_pad:2 * h_pad])
    u_g = jnp.tanh(iouf[:, 2 * h_pad:3 * h_pad] + iou_h[:, 2 * h_pad:3 * h_pad])
    wfx = iouf[:, 3 * h_pad:4 * h_pad]          # W_f x + b_f       (l, h)

    # Forget gates only on the gathered children: f_k = sig(Wf x_p + Uf h_k + bf)
    f_pre = jnp.dot(h_child, uf_ref[...],
                    preferred_element_type=jnp.float32)            # (C*l, h)
    fc = jnp.zeros((l_pad, h_pad), jnp.float32)
    for c in range(n_child):
        hc = h_child[c * l_pad:(c + 1) * l_pad]
        fg = jax.nn.sigmoid(f_pre[c * l_pad:(c + 1) * l_pad] + wfx)
        fc = fc + fg * hc                                          # (l, h)

    # NOTE: the reference module passes hs as cs (cell memories are never read
    # back), so sum_k f_k * h_k is the full forget contribution and the memory
    # cell c never needs to be stored across nodes.
    c_new = i_g * u_g + fc
    h_new = o_g * jnp.tanh(c_new)                                  # (l, h)

    # Scatter new rows into the hidden table.  Each node is written exactly
    # once and its row was zero before, so the add is an exact scatter; the
    # zero columns of `sc` for padding rows drop their garbage contributions.
    h_ref[...] = H + jnp.dot(sc, h_new, preferred_element_type=jnp.float32)


# ----------------------------------------------------------------------------
# Wrapper
# ----------------------------------------------------------------------------
def tree_lstm_pool(x, edge_index, w_iou, u_iou, b_iou, w_f, u_f, b_f):
    """JAX/Pallas equivalent of TreeLSTMPool.forward.

    x:          (n_nodes, x_size) float32
    edge_index: (2, n_edges) int  (row 0 = parent, row 1 = child)
    weights:    same shapes as the PyTorch module parameters.
    Returns hidden states of the root nodes, shape (n_roots, h_size).
    """
    n_nodes, x_size = x.shape
    h_size = w_f.shape[0]

    ei = np.asarray(edge_index)
    adj = np.zeros((n_nodes, n_nodes), dtype=np.int64)
    if ei.size:
        adj[ei[0], ei[1]] = 1

    levels = topo_levels(adj)
    n_levels = len(levels)
    roots = np.where(adj.sum(axis=0) == 0)[0]
    C = max(1, int(adj.sum(axis=1).max()))       # static max fan-out

    # Padded dims: lane dims to 128, matmul M / sublane dims to 8.
    h_pad = _round_up(h_size, 128)
    x_pad = _round_up(x_size, 128)
    n_pad = _round_up(n_nodes, 128)
    l_pad = _round_up(max(len(lv) for lv in levels), 8)

    # ---- static per-level topology tensors (host-side numpy) ---------------
    lvl_ids = np.zeros((n_levels, l_pad), np.int32)
    lvl_valid = np.zeros((n_levels, l_pad), np.float32)
    child_sel = np.zeros((n_levels, C * l_pad, n_pad), np.float32)
    scatter_t = np.zeros((n_levels, n_pad, l_pad), np.float32)
    for l, nodes in enumerate(levels):
        lvl_ids[l, :len(nodes)] = nodes
        lvl_valid[l, :len(nodes)] = 1.0
        for p, node in enumerate(nodes):
            kids = np.where(adj[node] > 0)[0]
            for c, k in enumerate(kids):
                child_sel[l, c * l_pad + p, k] = 1.0
            scatter_t[l, node, p] = 1.0

    # ---- per-level node features (static gather, done outside the kernel) --
    xp = jnp.zeros((n_nodes, x_pad), jnp.float32).at[:, :x_size].set(
        x.astype(jnp.float32))
    x_lvl = xp[jnp.asarray(lvl_ids)] * jnp.asarray(lvl_valid)[..., None]

    # ---- weight packing: (in, out) layout, gates [i|o|u|f], 128-lane aligned
    w_all = jnp.zeros((x_pad, 4 * h_pad), jnp.float32)
    for g in range(3):
        w_all = w_all.at[:x_size, g * h_pad:g * h_pad + h_size].set(
            jnp.transpose(w_iou[g]).astype(jnp.float32))
    w_all = w_all.at[:x_size, 3 * h_pad:3 * h_pad + h_size].set(
        jnp.transpose(w_f).astype(jnp.float32))

    u_iou_t = jnp.zeros((h_pad, 3 * h_pad), jnp.float32)
    for g in range(3):
        u_iou_t = u_iou_t.at[:h_size, g * h_pad:g * h_pad + h_size].set(
            jnp.transpose(u_iou[g]).astype(jnp.float32))
    u_f_t = jnp.zeros((h_pad, h_pad), jnp.float32).at[:h_size, :h_size].set(
        jnp.transpose(u_f).astype(jnp.float32))

    b_all = jnp.zeros((1, 4 * h_pad), jnp.float32)
    for g in range(3):
        b_all = b_all.at[0, g * h_pad:g * h_pad + h_size].set(
            b_iou[g].astype(jnp.float32))
    b_all = b_all.at[0, 3 * h_pad:3 * h_pad + h_size].set(
        jnp.reshape(b_f, (-1,)).astype(jnp.float32))
    # TODO(synk): optionally cast weights/selectors to bf16 on v6e/v7x for MXU
    # throughput; f32 kept here for bit-safe validation on all generations.

    # ---- explicit VMEM budget + cost hint ----------------------------------
    lvl_block_bytes = 4 * (l_pad * x_pad + C * l_pad * n_pad + n_pad * l_pad)
    weight_bytes = 4 * (x_pad * 4 * h_pad + h_pad * 3 * h_pad
                        + h_pad * h_pad + 4 * h_pad)
    out_bytes = 4 * n_pad * h_pad
    vmem_limit = int(min(max(2 * lvl_block_bytes + weight_bytes + out_bytes
                             + (8 << 20), 32 << 20), 96 << 20))

    flops_per_level = 2 * (C * l_pad * n_pad * h_pad       # child gather
                           + l_pad * x_pad * 4 * h_pad     # W [i|o|u|f] x
                           + l_pad * h_pad * 3 * h_pad     # U_iou h_sum
                           + C * l_pad * h_pad * h_pad     # U_f h_k
                           + n_pad * l_pad * h_pad)        # scatter
    trans_per_level = 4 * l_pad * h_pad + C * l_pad * h_pad
    cost = pl.CostEstimate(
        flops=int(n_levels * flops_per_level),
        transcendentals=int(n_levels * trans_per_level),
        bytes_accessed=int(n_levels * lvl_block_bytes + weight_bytes
                           + out_bytes),
    )

    h_all = pl.pallas_call(
        _tree_lstm_level_kernel,
        out_shape=jax.ShapeDtypeStruct((n_pad, h_pad), jnp.float32),
        grid_spec=pltpu.PrefetchScalarGridSpec(
            num_scalar_prefetch=0,
            grid=(n_levels,),
            in_specs=[
                pl.BlockSpec((1, l_pad, x_pad), lambda l: (l, 0, 0)),      # x / level
                pl.BlockSpec((1, C * l_pad, n_pad), lambda l: (l, 0, 0)),  # child sel
                pl.BlockSpec((1, n_pad, l_pad), lambda l: (l, 0, 0)),      # scatter
                pl.BlockSpec((x_pad, 4 * h_pad), lambda l: (0, 0)),        # W [iouf]^T
                pl.BlockSpec((h_pad, 3 * h_pad), lambda l: (0, 0)),        # U_iou^T
                pl.BlockSpec((h_pad, h_pad), lambda l: (0, 0)),            # U_f^T
                pl.BlockSpec((1, 4 * h_pad), lambda l: (0, 0)),            # b [iouf]
            ],
            out_specs=pl.BlockSpec((n_pad, h_pad), lambda l: (0, 0)),
        ),
        compiler_params=pltpu.CompilerParams(
            dimension_semantics=("arbitrary",),   # level recurrence is sequential
            vmem_limit_bytes=vmem_limit),
        cost_estimate=cost,
    )(x_lvl, jnp.asarray(child_sel), jnp.asarray(scatter_t),
      w_all, u_iou_t, u_f_t, b_all)

    return h_all[:n_nodes, :h_size][roots]


# ----------------------------------------------------------------------------
# Pure-numpy reference (mirrors the PyTorch module, incl. cs = hs behaviour)
# ----------------------------------------------------------------------------
def _sigmoid(z):
    return 1.0 / (1.0 + np.exp(-z))


def reference_numpy(x, adj, w_iou, u_iou, b_iou, w_f, u_f, b_f):
    n_nodes = x.shape[0]
    h_size = w_f.shape[0]
    h = np.zeros((n_nodes, h_size), dtype=np.float64)
    for nodes in topo_levels(adj):
        for idx in nodes:
            mask = adj[idx].astype(bool)
            hs = h[mask]
            cs = hs  # reproduces TreeLSTMPool: cell(x, h[mask], h[mask])
            h_sum = hs.sum(axis=0)
            iou = w_iou @ x[idx] + u_iou @ h_sum + b_iou   # (3, h)
            i, o, u = iou
            fs = (w_f @ x[idx])[:, None] + u_f @ hs.T + b_f
            i, o, fs = _sigmoid(i), _sigmoid(o), _sigmoid(fs)
            u = np.tanh(u)
            c = i * u + np.sum(fs * cs.T, axis=1)
            h[idx] = o * np.tanh(c)
    roots = np.where(adj.sum(axis=0) == 0)[0]
    return h[roots]


# ----------------------------------------------------------------------------
if __name__ == "__main__":
    x_size, h_size = 16, 32

    # --- graph 1: complete binary tree of depth 4 (15 nodes) ----------------
    parents, children = [], []
    for p in range(7):
        parents += [p, p]
        children += [2 * p + 1, 2 * p + 2]
    edge_index1 = np.asarray([parents, children], dtype=np.int32)
    n1 = 15

    # --- graph 2: forest = binary tree (15 nodes) + chain of 7 nodes --------
    parents2 = parents + [15, 16, 17, 18, 19, 20]
    children2 = children + [16, 17, 18, 19, 20, 21]
    edge_index2 = np.asarray([parents2, children2], dtype=np.int32)
    n2 = 22

    # Deterministic synthetic parameters (xavier-ish uniform, zero biases).
    key = jax.random.PRNGKey(0)
    k1, k2, k3, k4, kx1, kx2 = jax.random.split(key, 6)
    w_iou = jax.random.uniform(k1, (3, h_size, x_size), jnp.float32, -0.1, 0.1)
    u_iou = jax.random.uniform(k2, (3, h_size, h_size), jnp.float32, -0.1, 0.1)
    b_iou = jnp.zeros((3, h_size), jnp.float32)
    w_f = jax.random.uniform(k3, (h_size, x_size), jnp.float32, -0.1, 0.1)
    u_f = jax.random.uniform(k4, (h_size, h_size), jnp.float32, -0.1, 0.1)
    b_f = jnp.zeros((h_size, 1), jnp.float32)

    params_f64 = [np.asarray(a, np.float64)
                  for a in (w_iou, u_iou, b_iou, w_f, u_f, b_f)]

    for (n_nodes, edge_index, kx) in ((n1, edge_index1, kx1),
                                      (n2, edge_index2, kx2)):
        x = jax.random.normal(kx, (n_nodes, x_size), jnp.float32)
        adj = np.zeros((n_nodes, n_nodes), dtype=np.int64)
        adj[edge_index[0], edge_index[1]] = 1

        h_roots = tree_lstm_pool(x, edge_index,
                                 w_iou, u_iou, b_iou, w_f, u_f, b_f)
        h_roots = jax.block_until_ready(h_roots)

        ref = reference_numpy(np.asarray(x, np.float64), adj, *params_f64)
        np.testing.assert_allclose(np.asarray(h_roots), ref,
                                   rtol=1e-3, atol=1e-3)

    print("KERNEL_OK")
</pallas_src>

<mosaic_0001>
module attributes {stable_mosaic.version = 11 : i64} {
  func.func @_tree_lstm_level_kernel(%arg0: i32, %arg1: memref<1x8x128xf32, #tpu.memory_space<vmem>>, %arg2: memref<1x16x128xf32, #tpu.memory_space<vmem>>, %arg3: memref<1x128x8xf32, #tpu.memory_space<vmem>>, %arg4: memref<128x512xf32, #tpu.memory_space<vmem>>, %arg5: memref<128x384xf32, #tpu.memory_space<vmem>>, %arg6: memref<128x128xf32, #tpu.memory_space<vmem>>, %arg7: memref<1x512xf32, #tpu.memory_space<vmem>>, %arg8: memref<128x128xf32, #tpu.memory_space<vmem>>) attributes {dimension_semantics = [#tpu.dimension_semantics<arbitrary>], iteration_bounds = array<i64: 4>, scalar_prefetch = 0 : i64, scratch_operands = 0 : i64, tpu.core_type = #tpu.core_type<tc>, window_params = [{transform_indices = @transform_0, window_bounds = array<i64: 1, 8, 128>}, {transform_indices = @transform_1, window_bounds = array<i64: 1, 16, 128>}, {transform_indices = @transform_2, window_bounds = array<i64: 1, 128, 8>}, {pipeline_mode = #tpu.pipeline_mode<synchronous>, transform_indices = @transform_3, window_bounds = array<i64: 128, 512>}, {pipeline_mode = #tpu.pipeline_mode<synchronous>, transform_indices = @transform_4, window_bounds = array<i64: 128, 384>}, {pipeline_mode = #tpu.pipeline_mode<synchronous>, transform_indices = @transform_5, window_bounds = array<i64: 128, 128>}, {pipeline_mode = #tpu.pipeline_mode<synchronous>, transform_indices = @transform_6, window_bounds = array<i64: 1, 512>}, {pipeline_mode = #tpu.pipeline_mode<synchronous>, transform_indices = @transform_7, window_bounds = array<i64: 128, 128>}]} {
    %c0_i32 = arith.constant 0 : i32
    %0 = arith.cmpi eq, %arg0, %c0_i32 : i32
    %1 = arith.extui %0 : i1 to i32
    %c0_i32_0 = arith.constant 0 : i32
    %2 = arith.cmpi ne, %1, %c0_i32_0 : i32
    scf.if %2 {
      %cst_30 = arith.constant 0.000000e+00 : f32
      %72 = vector.broadcast %cst_30 : f32 to vector<128x128xf32>
      %c0_31 = arith.constant 0 : index
      %c0_32 = arith.constant 0 : index
      %73 = vector.load %arg8[%c0_31, %c0_32] : memref<128x128xf32, #tpu.memory_space<vmem>>, vector<128x128xf32>
      tpu.vector_store %arg8[%c0_31, %c0_32], %72 {strides = array<i32>} : memref<128x128xf32, #tpu.memory_space<vmem>>, vector<128x128xf32>,
    } else {
    }
    %c0 = arith.constant 0 : index
    %c0_1 = arith.constant 0 : index
    %3 = vector.load %arg8[%c0, %c0_1] : memref<128x128xf32, #tpu.memory_space<vmem>>, vector<128x128xf32>
    %c0_2 = arith.constant 0 : index
    %c0_3 = arith.constant 0 : index
    %c0_4 = arith.constant 0 : index
    %4 = vector.load %arg1[%c0_2, %c0_3, %c0_4] : memref<1x8x128xf32, #tpu.memory_space<vmem>>, vector<1x8x128xf32>
    %5 = vector.shape_cast %4 : vector<1x8x128xf32> to vector<8x128xf32>
    %c0_5 = arith.constant 0 : index
    %c0_6 = arith.constant 0 : index
    %c0_7 = arith.constant 0 : index
    %6 = vector.load %arg2[%c0_5, %c0_6, %c0_7] : memref<1x16x128xf32, #tpu.memory_space<vmem>>, vector<1x16x128xf32>
    %7 = vector.shape_cast %6 : vector<1x16x128xf32> to vector<16x128xf32>
    %c0_8 = arith.constant 0 : index
    %c0_9 = arith.constant 0 : index
    %c0_10 = arith.constant 0 : index
    %8 = vector.load %arg3[%c0_8, %c0_9, %c0_10] : memref<1x128x8xf32, #tpu.memory_space<vmem>>, vector<1x128x8xf32>
    %9 = vector.shape_cast %8 : vector<1x128x8xf32> to vector<128x8xf32>
    %cst = arith.constant dense<0.000000e+00> : vector<16x128xf32>
    %10 = tpu.matmul %7, %3, %cst {dimension_numbers = #tpu.dot_dimension_numbers<[1], [0], [0], [1], [0, 0, 1, 1], [], []>} : vector<16x128xf32>, vector<128x128xf32>, vector<16x128xf32> -> vector<16x128xf32>
    %11 = vector.extract_strided_slice %10 {offsets = [0, 0], sizes = [8, 128], strides = [1, 1]} : vector<16x128xf32> to vector<8x128xf32>
    %12 = vector.extract_strided_slice %10 {offsets = [8, 0], sizes = [8, 128], strides = [1, 1]} : vector<16x128xf32> to vector<8x128xf32>
    %13 = arith.addf %11, %12 : vector<8x128xf32>
    %c0_11 = arith.constant 0 : index
    %c0_12 = arith.constant 0 : index
    %14 = vector.load %arg4[%c0_11, %c0_12] : memref<128x512xf32, #tpu.memory_space<vmem>>, vector<128x512xf32>
    %cst_13 = arith.constant dense<0.000000e+00> : vector<8x512xf32>
    %15 = tpu.matmul %5, %14, %cst_13 {dimension_numbers = #tpu.dot_dimension_numbers<[1], [0], [0], [1], [0, 0, 1, 1], [], []>} : vector<8x128xf32>, vector<128x512xf32>, vector<8x512xf32> -> vector<8x512xf32>
    %c0_14 = arith.constant 0 : index
    %c0_15 = arith.constant 0 : index
    %16 = vector.load %arg7[%c0_14, %c0_15] : memref<1x512xf32, #tpu.memory_space<vmem>>, vector<1x512xf32>
    %17 = vector.broadcast %16 : vector<1x512xf32> to vector<8x512xf32>
    %18 = arith.addf %15, %17 : vector<8x512xf32>
    %c0_16 = arith.constant 0 : index
    %c0_17 = arith.constant 0 : index
    %19 = vector.load %arg5[%c0_16, %c0_17] : memref<128x384xf32, #tpu.memory_space<vmem>>, vector<128x384xf32>
    %cst_18 = arith.constant dense<0.000000e+00> : vector<8x384xf32>
    %20 = tpu.matmul %13, %19, %cst_18 {dimension_numbers = #tpu.dot_dimension_numbers<[1], [0], [0], [1], [0, 0, 1, 1], [], []>} : vector<8x128xf32>, vector<128x384xf32>, vector<8x384xf32> -> vector<8x384xf32>
    %21 = vector.extract_strided_slice %18 {offsets = [0, 0], sizes = [8, 128], strides = [1, 1]} : vector<8x512xf32> to vector<8x128xf32>
    %22 = vector.extract_strided_slice %20 {offsets = [0, 0], sizes = [8, 128], strides = [1, 1]} : vector<8x384xf32> to vector<8x128xf32>
    %23 = arith.addf %21, %22 : vector<8x128xf32>
    %24 = arith.negf %23 : vector<8x128xf32>
    %25 = math.exp %24 : vector<8x128xf32>
    %cst_19 = arith.constant 1.000000e+00 : f32
    %26 = vector.broadcast %cst_19 : f32 to vector<8x128xf32>
    %27 = arith.addf %26, %25 : vector<8x128xf32>
    %28 = arith.divf %26, %27 : vector<8x128xf32>
    %29 = vector.extract_strided_slice %18 {offsets = [0, 128], sizes = [8, 128], strides = [1, 1]} : vector<8x512xf32> to vector<8x128xf32>
    %30 = vector.extract_strided_slice %20 {offsets = [0, 128], sizes = [8, 128], strides = [1, 1]} : vector<8x384xf32> to vector<8x128xf32>
    %31 = arith.addf %29, %30 : vector<8x128xf32>
    %32 = arith.negf %31 : vector<8x128xf32>
    %33 = math.exp %32 : vector<8x128xf32>
    %cst_20 = arith.constant 1.000000e+00 : f32
    %34 = vector.broadcast %cst_20 : f32 to vector<8x128xf32>
    %35 = arith.addf %34, %33 : vector<8x128xf32>
    %36 = arith.divf %34, %35 : vector<8x128xf32>
    %37 = vector.extract_strided_slice %18 {offsets = [0, 256], sizes = [8, 128], strides = [1, 1]} : vector<8x512xf32> to vector<8x128xf32>
    %38 = vector.extract_strided_slice %20 {offsets = [0, 256], sizes = [8, 128], strides = [1, 1]} : vector<8x384xf32> to vector<8x128xf32>
    %39 = arith.addf %37, %38 : vector<8x128xf32>
    %40 = math.tanh %39 : vector<8x128xf32>
    %41 = vector.extract_strided_slice %18 {offsets = [0, 384], sizes = [8, 128], strides = [1, 1]} : vector<8x512xf32> to vector<8x128xf32>
    %c0_21 = arith.constant 0 : index
    %c0_22 = arith.constant 0 : index
    %42 = vector.load %arg6[%c0_21, %c0_22] : memref<128x128xf32, #tpu.memory_space<vmem>>, vector<128x128xf32>
    %cst_23 = arith.constant dense<0.000000e+00> : vector<16x128xf32>
    %43 = tpu.matmul %10, %42, %cst_23 {dimension_numbers = #tpu.dot_dimension_numbers<[1], [0], [0], [1], [0, 0, 1, 1], [], []>} : vector<16x128xf32>, vector<128x128xf32>, vector<16x128xf32> -> vector<16x128xf32>
    %cst_24 = arith.constant 0.000000e+00 : f32
    %44 = vector.broadcast %cst_24 : f32 to vector<8x128xf32>
    %45 = vector.extract_strided_slice %10 {offsets = [0, 0], sizes = [8, 128], strides = [1, 1]} : vector<16x128xf32> to vector<8x128xf32>
    %46 = vector.extract_strided_slice %43 {offsets = [0, 0], sizes = [8, 128], strides = [1, 1]} : vector<16x128xf32> to vector<8x128xf32>
    %47 = arith.addf %46, %41 : vector<8x128xf32>
    %48 = arith.negf %47 : vector<8x128xf32>
    %49 = math.exp %48 : vector<8x128xf32>
    %cst_25 = arith.constant 1.000000e+00 : f32
    %50 = vector.broadcast %cst_25 : f32 to vector<8x128xf32>
    %51 = arith.addf %50, %49 : vector<8x128xf32>
    %52 = arith.divf %50, %51 : vector<8x128xf32>
    %53 = arith.mulf %52, %45 : vector<8x128xf32>
    %54 = arith.addf %44, %53 : vector<8x128xf32>
    %55 = vector.extract_strided_slice %10 {offsets = [8, 0], sizes = [8, 128], strides = [1, 1]} : vector<16x128xf32> to vector<8x128xf32>
    %56 = vector.extract_strided_slice %43 {offsets = [8, 0], sizes = [8, 128], strides = [1, 1]} : vector<16x128xf32> to vector<8x128xf32>
    %57 = arith.addf %56, %41 : vector<8x128xf32>
    %58 = arith.negf %57 : vector<8x128xf32>
    %59 = math.exp %58 : vector<8x128xf32>
    %cst_26 = arith.constant 1.000000e+00 : f32
    %60 = vector.broadcast %cst_26 : f32 to vector<8x128xf32>
    %61 = arith.addf %60, %59 : vector<8x128xf32>
    %62 = arith.divf %60, %61 : vector<8x128xf32>
    %63 = arith.mulf %62, %55 : vector<8x128xf32>
    %64 = arith.addf %54, %63 : vector<8x128xf32>
    %65 = arith.mulf %28, %40 : vector<8x128xf32>
    %66 = arith.addf %65, %64 : vector<8x128xf32>
    %67 = math.tanh %66 : vector<8x128xf32>
    %68 = arith.mulf %36, %67 : vector<8x128xf32>
    %cst_27 = arith.constant dense<0.000000e+00> : vector<128x128xf32>
    %69 = tpu.matmul %9, %68, %cst_27 {dimension_numbers = #tpu.dot_dimension_numbers<[1], [0], [0], [1], [0, 0, 1, 1], [], []>} : vector<128x8xf32>, vector<8x128xf32>, vector<128x128xf32> -> vector<128x128xf32>
    %70 = arith.addf %3, %69 : vector<128x128xf32>
    %c0_28 = arith.constant 0 : index
    %c0_29 = arith.constant 0 : index
    %71 = vector.load %arg8[%c0_28, %c0_29] : memref<128x128xf32, #tpu.memory_space<vmem>>, vector<128x128xf32>
    tpu.vector_store %arg8[%c0_28, %c0_29], %70 {strides = array<i32>} : memref<128x128xf32, #tpu.memory_space<vmem>>, vector<128x128xf32>,
    return
  }
  func.func @transform_0(%arg0: i32) -> (i32, i32, i32) {
    %c0_i32 = arith.constant 0 : i32
    %c0_i32_0 = arith.constant 0 : i32
    %c0_i32_1 = arith.constant 0 : i32
    return %arg0, %c0_i32, %c0_i32_0 : i32, i32, i32
  }
  func.func @transform_1(%arg0: i32) -> (i32, i32, i32) {
    %c0_i32 = arith.constant 0 : i32
    %c0_i32_0 = arith.constant 0 : i32
    %c0_i32_1 = arith.constant 0 : i32
    return %arg0, %c0_i32, %c0_i32_0 : i32, i32, i32
  }
  func.func @transform_2(%arg0: i32) -> (i32, i32, i32) {
    %c0_i32 = arith.constant 0 : i32
    %c0_i32_0 = arith.constant 0 : i32
    %c0_i32_1 = arith.constant 0 : i32
    return %arg0, %c0_i32, %c0_i32_0 : i32, i32, i32
  }
  func.func @transform_3(%arg0: i32) -> (i32, i32) {
    %c0_i32 = arith.constant 0 : i32
    %c0_i32_0 = arith.constant 0 : i32
    %c0_i32_1 = arith.constant 0 : i32
    return %c0_i32, %c0_i32_0 : i32, i32
  }
  func.func @transform_4(%arg0: i32) -> (i32, i32) {
    %c0_i32 = arith.constant 0 : i32
    %c0_i32_0 = arith.constant 0 : i32
    %c0_i32_1 = arith.constant 0 : i32
    return %c0_i32, %c0_i32_0 : i32, i32
  }
  func.func @transform_5(%arg0: i32) -> (i32, i32) {
    %c0_i32 = arith.constant 0 : i32
    %c0_i32_0 = arith.constant 0 : i32
    %c0_i32_1 = arith.constant 0 : i32
    return %c0_i32, %c0_i32_0 : i32, i32
  }
  func.func @transform_6(%arg0: i32) -> (i32, i32) {
    %c0_i32 = arith.constant 0 : i32
    %c0_i32_0 = arith.constant 0 : i32
    %c0_i32_1 = arith.constant 0 : i32
    return %c0_i32, %c0_i32_0 : i32, i32
  }
  func.func @transform_7(%arg0: i32) -> (i32, i32) {
    %c0_i32 = arith.constant 0 : i32
    %c0_i32_0 = arith.constant 0 : i32
    %c0_i32_1 = arith.constant 0 : i32
    return %c0_i32, %c0_i32_0 : i32, i32
  }
}

</mosaic_0001>

<llo_original>
// kernel: tpu_custom_call.1
$region0: #{tpu_custom_call.1}
  #allocation0 [shape = 'u32[]', space=smem, size = 0x4, offset = 0x4, fixed_abs, tag = 'smem constant byte address 0x4 - core index']
  #allocation1 [shape = 'u32[144,128]{1,0:T(1,128)}', space=vmem, size = 0x12000, scoped, tag = 'internal scratch']
  %s0 = inlined_call_operand.vmem [shape: f32[4,8,128], index: 0, kind: input, shape index: {}]
  %s1 = inlined_call_operand.hbm [shape: f32[4,16,128], index: 1, kind: input, shape index: {}]
  %s2 = inlined_call_operand.vmem [shape: f32[4,128,8], index: 2, kind: input, shape index: {}]
  %s3 = inlined_call_operand.vmem [shape: f32[128,512], index: 3, kind: input, shape index: {}]
  %s4 = inlined_call_operand.hbm [shape: f32[128,384], index: 4, kind: input, shape index: {}]
  %s5 = inlined_call_operand.hbm [shape: f32[128,128], index: 5, kind: input, shape index: {}]
  %s6 = inlined_call_operand.vmem [shape: f32[1,512], index: 6, kind: input, shape index: {}]
  %s7 = inlined_call_operand.hbm [shape: f32[128,128], index: 7, kind: output, shape index: {}]
  %s8 = sld [smem:[#allocation0]]
  $region77: #{tpu_custom_call.1} parent=0
    _
  %s10 = ssub.s32 1, %s8
  %s11 = scalar_select 0, %s10, %s8
  $region1: #{tpu_custom_call.1} parent=0
    #allocation2 [shape = 'u8[16384]{0}', space=vmem, size = 0x4000, scoped, tag = 'input window, operand 1']
    #allocation3 [shape = 's32[2]{0}', space=sflag, size = 0x8, scoped, tag = 'scoped memory for tpu_custom_call.1']
    #allocation4 [shape = 's32[2]{0}', space=sflag, size = 0x8, scoped, tag = 'scoped memory for tpu_custom_call.1']
    #allocation5 [shape = 'u8[196608]{0}', space=vmem, size = 0x30000, scoped, tag = 'input window, operand 4, single buffered']
    #allocation6 [shape = 's32[1]{0}', space=sflag, size = 0x4, scoped, tag = 'scoped memory for tpu_custom_call.1']
    #allocation7 [shape = 'u8[65536]{0}', space=vmem, size = 0x10000, scoped, tag = 'input window, operand 5, single buffered']
    #allocation8 [shape = 'u8[65536]{0}', space=vmem, size = 0x10000, scoped, tag = 'output window, operand 0, single buffered']
    %12 = vsyncpa [#allocation3], 0
    %s13 = scalar_lea.sflag [#allocation3], 1
    %14 = vsyncpa %s13, 0
    %15 = vsyncpa [#allocation6], 0
    %16 = vsyncpa [#allocation4], 0
    loop: start=0, step=1, limit=6
    $region2: #{tpu_custom_call.1} parent=1 // loop_pre_header
      _
    $region3: #{tpu_custom_call.1} parent=1 // loop_header
      %s18 = sphi 0, %s22
      %p19 = scmp.ge.s32.totalorder %s18, 6
      %s28 = sphi 0, %s30
      %s31 = sphi 0, %s28
      %s32 = sphi 0, %s31
      %s48 = sphi 0, %s32
      %s54 = sphi 0, %s56
      %s57 = sphi 0, %s54
      %s58 = sphi 0, %s57
      %s74 = sphi 0, %s58
      %s80 = sphi 0, %s82
      %s83 = sphi 0, %s80
      %s84 = sphi 0, %s83
      %s100 = sphi 0, %s84
      %s104 = sphi 0, %s104
      %s106 = sphi 0, %s104
      %s107 = sphi 0, %s106
      %s121 = sphi 0, %s107
      %s125 = sphi 0, %s125
      %s127 = sphi 0, %s125
      %s128 = sphi 0, %s127
      %s142 = sphi 0, %s128
      %s146 = sphi 0, %s146
      %s148 = sphi 0, %s146
      %s149 = sphi 0, %s148
      %s163 = sphi 0, %s149
      %s167 = sphi 0, %s167
      %s169 = sphi 0, %s167
      %s170 = sphi 0, %s169
      %s184 = sphi 0, %s170
      %s188 = sphi 0, %s188
      %s190 = sphi 0, %s188
      %s191 = sphi 0, %s190
      %s205 = sphi 0, %s191
    $region4: #{tpu_custom_call.1} parent=1 // loop_header_branch
      %21 = sbr.rel (%p19) target = $region8
    $region5: #{tpu_custom_call.1} parent=1 // loop_body
      %s23 = ssub.s32 %s18, 1
      %s24 = ssub.s32 %s18, 2
      %s25 = sadd.s32 %s18, 1
      %s26 = ssub.s32 %s18, %s25
      %p27 = scmp.eq.s32.totalorder %s26, 0
      %s29 = sadd.s32 %s28, 1
      %s30 = scalar_select %p27, %s28, %s29
      %p33 = pneg %p27
      %p34 = scmp.eq.s32.totalorder %s18, 3
      %p35 = por %p33, %p34
      %p36 = scmp.ne.s32.totalorder %s28, %s31
      %p37 = scmp.eq.s32.totalorder %s18, 0
      %p38 = por %p36, %p37
      %p39 = scmp.ne.s32.totalorder %s28, %s31
      %p40 = scmp.eq.s32.totalorder %s23, 3
      %p41 = por %p39, %p40
      %p42 = scmp.ne.s32.totalorder %s31, %s32
      %p43 = scmp.eq.s32.totalorder %s23, 0
      %p44 = por %p42, %p43
      %p45 = scmp.ne.s32.totalorder %s31, %s32
      %p46 = scmp.eq.s32.totalorder %s24, 3
      %p47 = por %p45, %p46
      %p49 = scmp.ne.s32.totalorder %s32, %s48
      %p50 = scmp.eq.s32.totalorder %s24, 0
      %p51 = por %p49, %p50
      %s52 = ssub.s32 %s18, %s25
      %p53 = scmp.eq.s32.totalorder %s52, 0
      %s55 = sadd.s32 %s54, 1
      %s56 = scalar_select %p53, %s54, %s55
      %p59 = pneg %p53
      %p60 = scmp.eq.s32.totalorder %s18, 3
      %p61 = por %p59, %p60
      %p62 = scmp.ne.s32.totalorder %s54, %s57
      %p63 = scmp.eq.s32.totalorder %s18, 0
      %p64 = por %p62, %p63
      %p65 = scmp.ne.s32.totalorder %s54, %s57
      %p66 = scmp.eq.s32.totalorder %s23, 3
      %p67 = por %p65, %p66
      %p68 = scmp.ne.s32.totalorder %s57, %s58
      %p69 = scmp.eq.s32.totalorder %s23, 0
      %p70 = por %p68, %p69
      %p71 = scmp.ne.s32.totalorder %s57, %s58
      %p72 = scmp.eq.s32.totalorder %s24, 3
      %p73 = por %p71, %p72
      %p75 = scmp.ne.s32.totalorder %s58, %s74
      %p76 = scmp.eq.s32.totalorder %s24, 0
      %p77 = por %p75, %p76
      %s78 = ssub.s32 %s18, %s25
      %p79 = scmp.eq.s32.totalorder %s78, 0
      %s81 = sadd.s32 %s80, 1
      %s82 = scalar_select %p79, %s80, %s81
      %p85 = pneg %p79
      %p86 = scmp.eq.s32.totalorder %s18, 3
      %p87 = por %p85, %p86
      %p88 = scmp.ne.s32.totalorder %s80, %s83
      %p89 = scmp.eq.s32.totalorder %s18, 0
      %p90 = por %p88, %p89
      %p91 = scmp.ne.s32.totalorder %s80, %s83
      %p92 = scmp.eq.s32.totalorder %s23, 3
      %p93 = por %p91, %p92
      %p94 = scmp.ne.s32.totalorder %s83, %s84
      %p95 = scmp.eq.s32.totalorder %s23, 0
      %p96 = por %p94, %p95
      %p97 = scmp.ne.s32.totalorder %s83, %s84
      %p98 = scmp.eq.s32.totalorder %s24, 3
      %p99 = por %p97, %p98
      %p101 = scmp.ne.s32.totalorder %s84, %s100
      %p102 = scmp.eq.s32.totalorder %s24, 0
      %p103 = por %p101, %p102
      %s105 = sadd.s32 %s104, 1
      %p108 = scmp.eq.s32.totalorder %s18, 3
      %p109 = scmp.ne.s32.totalorder %s104, %s106
      %p110 = scmp.eq.s32.totalorder %s18, 0
      %p111 = por %p109, %p110
      %p112 = scmp.ne.s32.totalorder %s104, %s106
      %p113 = scmp.eq.s32.totalorder %s23, 3
      %p114 = por %p112, %p113
      %p115 = scmp.ne.s32.totalorder %s106, %s107
      %p116 = scmp.eq.s32.totalorder %s23, 0
      %p117 = por %p115, %p116
      %p118 = scmp.ne.s32.totalorder %s106, %s107
      %p119 = scmp.eq.s32.totalorder %s24, 3
      %p120 = por %p118, %p119
      %p122 = scmp.ne.s32.totalorder %s107, %s121
      %p123 = scmp.eq.s32.totalorder %s24, 0
      %p124 = por %p122, %p123
      %s126 = sadd.s32 %s125, 1
      %p129 = scmp.eq.s32.totalorder %s18, 3
      %p130 = scmp.ne.s32.totalorder %s125, %s127
      %p131 = scmp.eq.s32.totalorder %s18, 0
      %p132 = por %p130, %p131
      %p133 = scmp.ne.s32.totalorder %s125, %s127
      %p134 = scmp.eq.s32.totalorder %s23, 3
      %p135 = por %p133, %p134
      %p136 = scmp.ne.s32.totalorder %s127, %s128
      %p137 = scmp.eq.s32.totalorder %s23, 0
      %p138 = por %p136, %p137
      %p139 = scmp.ne.s32.totalorder %s127, %s128
      %p140 = scmp.eq.s32.totalorder %s24, 3
      %p141 = por %p139, %p140
      %p143 = scmp.ne.s32.totalorder %s128, %s142
      %p144 = scmp.eq.s32.totalorder %s24, 0
      %p145 = por %p143, %p144
      %s147 = sadd.s32 %s146, 1
      %p150 = scmp.eq.s32.totalorder %s18, 3
      %p151 = scmp.ne.s32.totalorder %s146, %s148
      %p152 = scmp.eq.s32.totalorder %s18, 0
      %p153 = por %p151, %p152
      %p154 = scmp.ne.s32.totalorder %s146, %s148
      %p155 = scmp.eq.s32.totalorder %s23, 3
      %p156 = por %p154, %p155
      %p157 = scmp.ne.s32.totalorder %s148, %s149
      %p158 = scmp.eq.s32.totalorder %s23, 0
      %p159 = por %p157, %p158
      %p160 = scmp.ne.s32.totalorder %s148, %s149
      %p161 = scmp.eq.s32.totalorder %s24, 3
      %p162 = por %p160, %p161
      %p164 = scmp.ne.s32.totalorder %s149, %s163
      %p165 = scmp.eq.s32.totalorder %s24, 0
      %p166 = por %p164, %p165
      %s168 = sadd.s32 %s167, 1
      %p171 = scmp.eq.s32.totalorder %s18, 3
      %p172 = scmp.ne.s32.totalorder %s167, %s169
      %p173 = scmp.eq.s32.totalorder %s18, 0
      %p174 = por %p172, %p173
      %p175 = scmp.ne.s32.totalorder %s167, %s169
      %p176 = scmp.eq.s32.totalorder %s23, 3
      %p177 = por %p175, %p176
      %p178 = scmp.ne.s32.totalorder %s169, %s170
      %p179 = scmp.eq.s32.totalorder %s23, 0
      %p180 = por %p178, %p179
      %p181 = scmp.ne.s32.totalorder %s169, %s170
      %p182 = scmp.eq.s32.totalorder %s24, 3
      %p183 = por %p181, %p182
      %p185 = scmp.ne.s32.totalorder %s170, %s184
      %p186 = scmp.eq.s32.totalorder %s24, 0
      %p187 = por %p185, %p186
      %s189 = sadd.s32 %s188, 1
      %p192 = scmp.eq.s32.totalorder %s18, 3
      %p193 = scmp.ne.s32.totalorder %s188, %s190
      %p194 = scmp.eq.s32.totalorder %s18, 0
      %p195 = por %p193, %p194
      %p196 = scmp.ne.s32.totalorder %s188, %s190
      %p197 = scmp.eq.s32.totalorder %s23, 3
      %p198 = por %p196, %p197
      %p199 = scmp.ne.s32.totalorder %s190, %s191
      %p200 = scmp.eq.s32.totalorder %s23, 0
      %p201 = por %p199, %p200
      %p202 = scmp.ne.s32.totalorder %s190, %s191
      %p203 = scmp.eq.s32.totalorder %s24, 3
      %p204 = por %p202, %p203
      %p206 = scmp.ne.s32.totalorder %s191, %s205
      %p207 = scmp.eq.s32.totalorder %s24, 0
      %p208 = por %p206, %p207
      %p209 = scmp.le.s32.totalorder 1, %s18
      %p210 = scmp.lt.s32.totalorder %s18, 5
      %p211 = pnand %p209, %p210
      %p212 = pneg %p211
      // Predicated region
      $region9: #{tpu_custom_call.1} parent=5 // pred_check
        _
      $region10: #{tpu_custom_call.1} parent=5 // pred_check_branch
        %214 = sbr.rel (%p211) target = $region12
      $region11: #{tpu_custom_call.1} parent=5 // pred_region
        %s215 = ssub.s32 %s18, 1
        // Predicated region
        $region13: #{tpu_custom_call.1} parent=11 // pred_check
          %p216 = pneg %p117
        $region14: #{tpu_custom_call.1} parent=11 // pred_check_branch
          %218 = sbr.rel (%p216) target = $region16
        $region15: #{tpu_custom_call.1} parent=11 // pred_region
          _
        $region16: #{tpu_custom_call.1} parent=11 // pred_fallthru
          _
        // Predicated region
        $region17: #{tpu_custom_call.1} parent=11 // pred_check
          %p219 = pneg %p138
        $region18: #{tpu_custom_call.1} parent=11 // pred_check_branch
          %221 = sbr.rel (%p219) target = $region20
        $region19: #{tpu_custom_call.1} parent=11 // pred_region
          %s223 = ssub.s32 6144, 6144
          %224 = vsyncadd [#allocation6], %s223
          %s225 = sshll.u32 [#allocation5], 4
          %s226 = int_to_ptr.vmem [resolvable:$true] %s225
          %231 = dma.hbm_to_vmem [thread:$0]  %s4, 6144, %s226, [#allocation6], 384, 384, 24
        $region20: #{tpu_custom_call.1} parent=11 // pred_fallthru
          _
        // Predicated region
        $region21: #{tpu_custom_call.1} parent=11 // pred_check
          %p232 = pneg %p159
        $region22: #{tpu_custom_call.1} parent=11 // pred_check_branch
          %234 = sbr.rel (%p232) target = $region24
        $region23: #{tpu_custom_call.1} parent=11 // pred_region
          %s236 = ssub.s32 2048, 2048
          %237 = vsyncadd [#allocation6], %s236
          %s238 = sshll.u32 [#allocation7], 4
          %s239 = int_to_ptr.vmem [resolvable:$true] %s238
          %244 = dma.hbm_to_vmem [thread:$0]  %s5, 2048, %s239, [#allocation6], 128, 128, 8
        $region24: #{tpu_custom_call.1} parent=11 // pred_fallthru
          _
        // Predicated region
        $region25: #{tpu_custom_call.1} parent=11 // pred_check
          %p245 = pneg %p180
        $region26: #{tpu_custom_call.1} parent=11 // pred_check_branch
          %247 = sbr.rel (%p245) target = $region28
        $region27: #{tpu_custom_call.1} parent=11 // pred_region
          _
        $region28: #{tpu_custom_call.1} parent=11 // pred_fallthru
          _
      $region12: #{tpu_custom_call.1} parent=5 // pred_fallthru
        _
      %p248 = scmp.lt.s32.totalorder %s18, 4
      // Predicated region
      $region29: #{tpu_custom_call.1} parent=5 // pred_check
        %p249 = pneg %p248
      $region30: #{tpu_custom_call.1} parent=5 // pred_check_branch
        %251 = sbr.rel (%p249) target = $region32
      $region31: #{tpu_custom_call.1} parent=5 // pred_region
        // Predicated region
        $region33: #{tpu_custom_call.1} parent=31 // pred_check
          %p252 = pneg %p38
        $region34: #{tpu_custom_call.1} parent=31 // pred_check_branch
          %254 = sbr.rel (%p252) target = $region36
        $region35: #{tpu_custom_call.1} parent=31 // pred_region
          %p255 = scmp.lt.s32.totalorder %s18, 3
          %s256 = scalar_select %p255, %s18, 3
          %s257 = smul.addr %s256, 8
          %s258 = scalar_lea.vmem %s0, %s257
        $region36: #{tpu_custom_call.1} parent=31 // pred_fallthru
          _
        // Predicated region
        $region37: #{tpu_custom_call.1} parent=31 // pred_check
          %p259 = pneg %p64
        $region38: #{tpu_custom_call.1} parent=31 // pred_check_branch
          %261 = sbr.rel (%p259) target = $region40
        $region39: #{tpu_custom_call.1} parent=31 // pred_region
          %s262 = sand.u32 %s54, 1
          %s263 = scalar_lea.sflag [#allocation3], %s262
          %s264 = sand.u32 %s54, 1
          %s265 = smul.addr %s264, 16
          %s266 = scalar_lea.vmem [#allocation2], %s265
          %s268 = ssub.s32 256, 256
          %269 = vsyncadd %s263, %s268
          %s270 = smul.addr %s18, 2
          %s271 = smul.addr %s270, 128
          %s272 = scalar_lea.hbm %s1, %s271
          %s273 = sshll.u32 %s266, 4
          %s274 = int_to_ptr.vmem [resolvable:$true] %s273
          %279 = dma.hbm_to_vmem [thread:$0]  %s272, 256, %s274, %s263, 128, 128, 8
        $region40: #{tpu_custom_call.1} parent=31 // pred_fallthru
          _
        // Predicated region
        $region41: #{tpu_custom_call.1} parent=31 // pred_check
          %p280 = pneg %p90
        $region42: #{tpu_custom_call.1} parent=31 // pred_check_branch
          %282 = sbr.rel (%p280) target = $region44
        $region43: #{tpu_custom_call.1} parent=31 // pred_region
          %p283 = scmp.lt.s32.totalorder %s18, 3
          %s284 = scalar_select %p283, %s18, 3
          %s285 = smul.addr %s284, 16
          %s286 = smul.addr %s285, 8
          %s287 = scalar_lea.vmem %s2, %s286
        $region44: #{tpu_custom_call.1} parent=31 // pred_fallthru
          _
      $region32: #{tpu_custom_call.1} parent=5 // pred_fallthru
        _
      %p288 = scmp.le.s32.totalorder 1, %s18
      %p289 = scmp.lt.s32.totalorder %s18, 5
      %p290 = pnand %p288, %p289
      %p291 = pneg %p290
      // Predicated region
      $region45: #{tpu_custom_call.1} parent=5 // pred_check
        _
      $region46: #{tpu_custom_call.1} parent=5 // pred_check_branch
        %293 = sbr.rel (%p290) target = $region48
      $region47: #{tpu_custom_call.1} parent=5 // pred_region
        %s294 = ssub.s32 %s18, 1
        %s295 = sand.u32 %s57, 1
        %s296 = scalar_lea.sflag [#allocation3], %s295
        %s297 = sand.u32 %s57, 1
        %s298 = smul.addr %s297, 16
        %s299 = scalar_lea.vmem [#allocation2], %s298
        // Predicated region
        $region49: #{tpu_custom_call.1} parent=47 // pred_check
          %p300 = pneg %p70
        $region50: #{tpu_custom_call.1} parent=47 // pred_check_branch
          %302 = sbr.rel (%p300) target = $region52
        $region51: #{tpu_custom_call.1} parent=47 // pred_region
          %303 = dma.done %s296, 256
        $region52: #{tpu_custom_call.1} parent=47 // pred_fallthru
          _
        // Predicated region
        $region53: #{tpu_custom_call.1} parent=47 // pred_check
          %p304 = pneg %p138
        $region54: #{tpu_custom_call.1} parent=47 // pred_check_branch
          %306 = sbr.rel (%p304) target = $region56
        $region55: #{tpu_custom_call.1} parent=47 // pred_region
          %307 = dma.done [#allocation6], 6144
        $region56: #{tpu_custom_call.1} parent=47 // pred_fallthru
          _
        // Predicated region
        $region57: #{tpu_custom_call.1} parent=47 // pred_check
          %p308 = pneg %p159
        $region58: #{tpu_custom_call.1} parent=47 // pred_check_branch
          %310 = sbr.rel (%p308) target = $region60
        $region59: #{tpu_custom_call.1} parent=47 // pred_region
          %311 = dma.done [#allocation6], 2048
        $region60: #{tpu_custom_call.1} parent=47 // pred_fallthru
          _
        %p312 = scmp.lt.s32.totalorder %s23, 3
        %s313 = scalar_select %p312, %s23, 3
        %s314 = smul.addr %s313, 8
        %s315 = scalar_lea.vmem %s0, %s314
        %p316 = pneg %p44
        %p317 = pneg %p41
        %s318 = sand.u32 %s57, 1
        %s319 = scalar_lea.sflag [#allocation3], %s318
        %s320 = sand.u32 %s57, 1
        %s321 = smul.addr %s320, 16
        %s322 = scalar_lea.vmem [#allocation2], %s321
        %p323 = pneg %p70
        %p324 = pneg %p67
        %p325 = scmp.lt.s32.totalorder %s23, 3
        %s326 = scalar_select %p325, %s23, 3
        %s327 = smul.addr %s326, 16
        %s328 = smul.addr %s327, 8
        %s329 = scalar_lea.vmem %s2, %s328
        %p330 = pneg %p96
        %p331 = pneg %p93
        %p332 = pneg %p117
        %p333 = pneg %p114
        %p334 = pneg %p138
        %p335 = pneg %p135
        %p336 = pneg %p159
        %p337 = pneg %p156
        %p338 = pneg %p180
        %p339 = pneg %p177
        %p340 = pneg %p201
        %p341 = pneg %p198
        %p342 = scmp.lt.s32.totalorder %s23, 3
        %s343 = scalar_select %p342, %s23, 3
        %s344 = smul.addr %s343, 8
        %s345 = scalar_lea.vmem %s0, %s344
        %p346 = scmp.lt.s32.totalorder %s23, 3
        %s347 = scalar_select %p346, %s23, 3
        %s348 = smul.addr %s347, 16
        %s349 = smul.addr %s348, 8
        %s350 = scalar_lea.vmem %s2, %s349
        %p351 = scmp.eq.s32.totalorder %s23, 0
        // Predicated region
        $region61: #{tpu_custom_call.1} parent=47 // pred_check
          %p352 = pneg %p351
        $region62: #{tpu_custom_call.1} parent=47 // pred_check_branch
          %354 = sbr.rel (%p352) target = $region64
        $region63: #{tpu_custom_call.1} parent=47 // pred_region
          %355 = vst [vmem:[#allocation8] sm:$0xff] 0.0
          %356 = vst [vmem:[#allocation8 + $0x8] sm:$0xff] 0.0
          %357 = vst [vmem:[#allocation8 + $0x10] sm:$0xff] 0.0
          %358 = vst [vmem:[#allocation8 + $0x18] sm:$0xff] 0.0
          %359 = vst [vmem:[#allocation8 + $0x20] sm:$0xff] 0.0
          %360 = vst [vmem:[#allocation8 + $0x28] sm:$0xff] 0.0
          %361 = vst [vmem:[#allocation8 + $0x30] sm:$0xff] 0.0
          %362 = vst [vmem:[#allocation8 + $0x38] sm:$0xff] 0.0
          %363 = vst [vmem:[#allocation8 + $0x40] sm:$0xff] 0.0
          %364 = vst [vmem:[#allocation8 + $0x48] sm:$0xff] 0.0
          %365 = vst [vmem:[#allocation8 + $0x50] sm:$0xff] 0.0
          %366 = vst [vmem:[#allocation8 + $0x58] sm:$0xff] 0.0
          %367 = vst [vmem:[#allocation8 + $0x60] sm:$0xff] 0.0
          %368 = vst [vmem:[#allocation8 + $0x68] sm:$0xff] 0.0
          %369 = vst [vmem:[#allocation8 + $0x70] sm:$0xff] 0.0
          %370 = vst [vmem:[#allocation8 + $0x78] sm:$0xff] 0.0
        $region64: #{tpu_custom_call.1} parent=47 // pred_fallthru
          _
        %v371 = vld [vmem:[#allocation8] sm:$0xff]
        %v372 = vld [vmem:[#allocation8 + $0x8] sm:$0xff]
        %v373 = vld [vmem:[#allocation8 + $0x10] sm:$0xff]
        %v374 = vld [vmem:[#allocation8 + $0x18] sm:$0xff]
        %v375 = vld [vmem:[#allocation8 + $0x20] sm:$0xff]
        %v376 = vld [vmem:[#allocation8 + $0x28] sm:$0xff]
        %v377 = vld [vmem:[#allocation8 + $0x30] sm:$0xff]
        %v378 = vld [vmem:[#allocation8 + $0x38] sm:$0xff]
        %v379 = vld [vmem:[#allocation8 + $0x40] sm:$0xff]
        %v380 = vld [vmem:[#allocation8 + $0x48] sm:$0xff]
        %v381 = vld [vmem:[#allocation8 + $0x50] sm:$0xff]
        %v382 = vld [vmem:[#allocation8 + $0x58] sm:$0xff]
        %v383 = vld [vmem:[#allocation8 + $0x60] sm:$0xff]
        %v384 = vld [vmem:[#allocation8 + $0x68] sm:$0xff]
        %v385 = vld [vmem:[#allocation8 + $0x70] sm:$0xff]
        %v386 = vld [vmem:[#allocation8 + $0x78] sm:$0xff]
        %v387 = vld [vmem:[%s345] sm:$0xff]
        %v388 = vld [vmem:[%s299] sm:$0xff]
        %v389 = vld [vmem:[%s299 + $0x8] sm:$0xff]
        %v390 = vld [vmem:[%s350] sm:$0xff]
        %v391 = vld [vmem:[%s350 + $0x8] sm:$0xff]
        %v392 = vld [vmem:[%s350 + $0x10] sm:$0xff]
        %v393 = vld [vmem:[%s350 + $0x18] sm:$0xff]
        %v394 = vld [vmem:[%s350 + $0x20] sm:$0xff]
        %v395 = vld [vmem:[%s350 + $0x28] sm:$0xff]
        %v396 = vld [vmem:[%s350 + $0x30] sm:$0xff]
        %v397 = vld [vmem:[%s350 + $0x38] sm:$0xff]
        %v398 = vld [vmem:[%s350 + $0x40] sm:$0xff]
        %v399 = vld [vmem:[%s350 + $0x48] sm:$0xff]
        %v400 = vld [vmem:[%s350 + $0x50] sm:$0xff]
        %v401 = vld [vmem:[%s350 + $0x58] sm:$0xff]
        %v402 = vld [vmem:[%s350 + $0x60] sm:$0xff]
        %v403 = vld [vmem:[%s350 + $0x68] sm:$0xff]
        %v404 = vld [vmem:[%s350 + $0x70] sm:$0xff]
        %v405 = vld [vmem:[%s350 + $0x78] sm:$0xff]
        %406 = vmatprep.subr.mxu0 0.0
        %407 = vmatpush1.msra.mxu0 %v371
        %408 = vmatprep.subr.mxu0 0.0
        %409 = vmatpush1.msra.mxu0 %v372
        %410 = vmatprep.subr.mxu0 0.0
        %411 = vmatpush1.msra.mxu0 %v373
        %412 = vmatprep.subr.mxu0 0.0
        %413 = vmatpush1.msra.mxu0 %v374
        %414 = vmatprep.subr.mxu0 0.0
        %415 = vmatpush1.msra.mxu0 %v375
        %416 = vmatprep.subr.mxu0 0.0
        %417 = vmatpush1.msra.mxu0 %v376
        %418 = vmatprep.subr.mxu0 0.0
        %419 = vmatpush1.msra.mxu0 %v377
        %420 = vmatprep.subr.mxu0 0.0
        %421 = vmatpush1.msra.mxu0 %v378
        %422 = vmatprep.subr.mxu0 0.0
        %423 = vmatpush1.msra.mxu0 %v379
        %424 = vmatprep.subr.mxu0 0.0
        %425 = vmatpush1.msra.mxu0 %v380
        %426 = vmatprep.subr.mxu0 0.0
        %427 = vmatpush1.msra.mxu0 %v381
        %428 = vmatprep.subr.mxu0 0.0
        %429 = vmatpush1.msra.mxu0 %v382
        %430 = vmatprep.subr.mxu0 0.0
        %431 = vmatpush1.msra.mxu0 %v383
        %432 = vmatprep.subr.mxu0 0.0
        %433 = vmatpush1.msra.mxu0 %v384
        %434 = vmatprep.subr.mxu0 0.0
        %435 = vmatpush1.msra.mxu0 %v385
        %436 = vmatprep.subr.mxu0 0.0
        %437 = vmatpush1.msra.mxu0 %v386
        %438 = vmatprep.subr.mxu0 0.0
        %439 = vmatpush1.msra.mxu0 0.0
        %440 = vmatprep.subr.mxu0 0.0
        %441 = vmatpush1.msra.mxu0 0.0
        %442 = vmatprep.subr.mxu0 0.0
        %443 = vmatpush1.msra.mxu0 0.0
        %444 = vmatprep.subr.mxu0 0.0
        %445 = vmatpush1.msra.mxu0 0.0
        %446 = vmatprep.subr.mxu0 0.0
        %447 = vmatpush1.msra.mxu0 0.0
        %448 = vmatprep.subr.mxu0 0.0
        %449 = vmatpush1.msra.mxu0 0.0
        %450 = vmatprep.subr.mxu0 0.0
        %451 = vmatpush1.msra.mxu0 0.0
        %452 = vmatprep.subr.mxu0 0.0
        %453 = vmatpush1.msra.mxu0 0.0
        %454 = vmatprep.subr.mxu0 0.0
        %455 = vmatpush1.msra.mxu0 0.0
        %456 = vmatprep.subr.mxu0 0.0
        %457 = vmatpush1.msra.mxu0 0.0
        %458 = vmatprep.subr.mxu0 0.0
        %459 = vmatpush1.msra.mxu0 0.0
        %460 = vmatprep.subr.mxu0 0.0
        %461 = vmatpush1.msra.mxu0 0.0
        %462 = vmatprep.subr.mxu0 0.0
        %463 = vmatpush1.msra.mxu0 0.0
        %464 = vmatprep.subr.mxu0 0.0
        %465 = vmatpush1.msra.mxu0 0.0
        %466 = vmatprep.subr.mxu0 0.0
        %467 = vmatpush1.msra.mxu0 0.0
        %468 = vmatprep.subr.mxu0 0.0
        %469 = vmatpush1.msra.mxu0 0.0
        %470 = vmatprep.mubr.f32.mxu0 0.0
        %471 = vmatmul.mubr.f32.gmra.mrb[0].mxu0 %v388
        %v472 = vpop.f32.mrb[0].mxu0
        %v473 = vadd.f32 0.0, %v472
        %v474 = vpop.f32.mrb[0].mxu0
        %475 = vmatprep.mubr.f32.mxu0 0.0
        %476 = vmatmul.mubr.f32.gmra.mrb[0].mxu0 %v389
        %v477 = vpop.f32.mrb[0].mxu0
        %v478 = vadd.f32 0.0, %v477
        %v479 = vpop.f32.mrb[0].mxu0
        %480 = vdwg.mxu0
        %v481 = vadd.f32 %v473, %v478
        %v482 = vld [vmem:[%s3] sm:$0xff]
        %v483 = vld [vmem:[%s3 + $0x8] sm:$0xff]
        %v484 = vld [vmem:[%s3 + $0x10] sm:$0xff]
        %v485 = vld [vmem:[%s3 + $0x18] sm:$0xff]
        %v486 = vld [vmem:[%s3 + $0x20] sm:$0xff]
        %v487 = vld [vmem:[%s3 + $0x28] sm:$0xff]
        %v488 = vld [vmem:[%s3 + $0x30] sm:$0xff]
        %v489 = vld [vmem:[%s3 + $0x38] sm:$0xff]
        %v490 = vld [vmem:[%s3 + $0x40] sm:$0xff]
        %v491 = vld [vmem:[%s3 + $0x48] sm:$0xff]
        %v492 = vld [vmem:[%s3 + $0x50] sm:$0xff]
        %v493 = vld [vmem:[%s3 + $0x58] sm:$0xff]
        %v494 = vld [vmem:[%s3 + $0x60] sm:$0xff]
        %v495 = vld [vmem:[%s3 + $0x68] sm:$0xff]
        %v496 = vld [vmem:[%s3 + $0x70] sm:$0xff]
        %v497 = vld [vmem:[%s3 + $0x78] sm:$0xff]
        %v498 = vld [vmem:[%s3 + $0x80] sm:$0xff]
        %v499 = vld [vmem:[%s3 + $0x88] sm:$0xff]
        %v500 = vld [vmem:[%s3 + $0x90] sm:$0xff]
        %v501 = vld [vmem:[%s3 + $0x98] sm:$0xff]
        %v502 = vld [vmem:[%s3 + $0xa0] sm:$0xff]
        %v503 = vld [vmem:[%s3 + $0xa8] sm:$0xff]
        %v504 = vld [vmem:[%s3 + $0xb0] sm:$0xff]
        %v505 = vld [vmem:[%s3 + $0xb8] sm:$0xff]
        %v506 = vld [vmem:[%s3 + $0xc0] sm:$0xff]
        %v507 = vld [vmem:[%s3 + $0xc8] sm:$0xff]
        %v508 = vld [vmem:[%s3 + $0xd0] sm:$0xff]
        %v509 = vld [vmem:[%s3 + $0xd8] sm:$0xff]
        %v510 = vld [vmem:[%s3 + $0xe0] sm:$0xff]
        %v511 = vld [vmem:[%s3 + $0xe8] sm:$0xff]
        %v512 = vld [vmem:[%s3 + $0xf0] sm:$0xff]
        %v513 = vld [vmem:[%s3 + $0xf8] sm:$0xff]
        %v514 = vld [vmem:[%s3 + $0x100] sm:$0xff]
        %v515 = vld [vmem:[%s3 + $0x108] sm:$0xff]
        %v516 = vld [vmem:[%s3 + $0x110] sm:$0xff]
        %v517 = vld [vmem:[%s3 + $0x118] sm:$0xff]
        %v518 = vld [vmem:[%s3 + $0x120] sm:$0xff]
        %v519 = vld [vmem:[%s3 + $0x128] sm:$0xff]
        %v520 = vld [vmem:[%s3 + $0x130] sm:$0xff]
        %v521 = vld [vmem:[%s3 + $0x138] sm:$0xff]
        %v522 = vld [vmem:[%s3 + $0x140] sm:$0xff]
        %v523 = vld [vmem:[%s3 + $0x148] sm:$0xff]
        %v524 = vld [vmem:[%s3 + $0x150] sm:$0xff]
        %v525 = vld [vmem:[%s3 + $0x158] sm:$0xff]
        %v526 = vld [vmem:[%s3 + $0x160] sm:$0xff]
        %v527 = vld [vmem:[%s3 + $0x168] sm:$0xff]
        %v528 = vld [vmem:[%s3 + $0x170] sm:$0xff]
        %v529 = vld [vmem:[%s3 + $0x178] sm:$0xff]
        %v530 = vld [vmem:[%s3 + $0x180] sm:$0xff]
        %v531 = vld [vmem:[%s3 + $0x188] sm:$0xff]
        %v532 = vld [vmem:[%s3 + $0x190] sm:$0xff]
        %v533 = vld [vmem:[%s3 + $0x198] sm:$0xff]
        %v534 = vld [vmem:[%s3 + $0x1a0] sm:$0xff]
        %v535 = vld [vmem:[%s3 + $0x1a8] sm:$0xff]
        %v536 = vld [vmem:[%s3 + $0x1b0] sm:$0xff]
        %v537 = vld [vmem:[%s3 + $0x1b8] sm:$0xff]
        %v538 = vld [vmem:[%s3 + $0x1c0] sm:$0xff]
        %v539 = vld [vmem:[%s3 + $0x1c8] sm:$0xff]
        %v540 = vld [vmem:[%s3 + $0x1d0] sm:$0xff]
        %v541 = vld [vmem:[%s3 + $0x1d8] sm:$0xff]
        %v542 = vld [vmem:[%s3 + $0x1e0] sm:$0xff]
        %v543 = vld [vmem:[%s3 + $0x1e8] sm:$0xff]
        %v544 = vld [vmem:[%s3 + $0x1f0] sm:$0xff]
        %v545 = vld [vmem:[%s3 + $0x1f8] sm:$0xff]
        %v546 = vld [vmem:[%s6] sm:$0xf]
        %v548 = vlaneseq
        %v549 = vshrl.u32 %v548, 7
        %v550 = vsub.s32 0, %v549
        %v551 = vrot.slane %v546, %v550
        %v552 = vlaneseq
        %v553 = vshrl.u32 %v552, 7
        %v554 = vsub.s32 1, %v553
        %v555 = vrot.slane %v546, %v554
        %v556 = vlaneseq
        %v557 = vshrl.u32 %v556, 7
        %v558 = vsub.s32 2, %v557
        %v559 = vrot.slane %v546, %v558
        %v560 = vlaneseq
        %v561 = vshrl.u32 %v560, 7
        %v562 = vsub.s32 3, %v561
        %v563 = vrot.slane %v546, %v562
        %568 = vmatprep.subr.mxu0 %v483
        %569 = vmatpush1.msra.mxu0 %v482
        %570 = vmatprep.subr.mxu0 %v487
        %571 = vmatpush1.msra.mxu0 %v486
        %572 = vmatprep.subr.mxu0 %v491
        %573 = vmatpush1.msra.mxu0 %v490
        %574 = vmatprep.subr.mxu0 %v495
        %575 = vmatpush1.msra.mxu0 %v494
        %576 = vmatprep.subr.mxu0 %v499
        %577 = vmatpush1.msra.mxu0 %v498
        %578 = vmatprep.subr.mxu0 %v503
        %579 = vmatpush1.msra.mxu0 %v502
        %580 = vmatprep.subr.mxu0 %v507
        %581 = vmatpush1.msra.mxu0 %v506
        %582 = vmatprep.subr.mxu0 %v511
        %583 = vmatpush1.msra.mxu0 %v510
        %584 = vmatprep.subr.mxu0 %v515
        %585 = vmatpush1.msra.mxu0 %v514
        %586 = vmatprep.subr.mxu0 %v519
        %587 = vmatpush1.msra.mxu0 %v518
        %588 = vmatprep.subr.mxu0 %v523
        %589 = vmatpush1.msra.mxu0 %v522
        %590 = vmatprep.subr.mxu0 %v527
        %591 = vmatpush1.msra.mxu0 %v526
        %592 = vmatprep.subr.mxu0 %v531
        %593 = vmatpush1.msra.mxu0 %v530
        %594 = vmatprep.subr.mxu0 %v535
        %595 = vmatpush1.msra.mxu0 %v534
        %596 = vmatprep.subr.mxu0 %v539
        %597 = vmatpush1.msra.mxu0 %v538
        %598 = vmatprep.subr.mxu0 %v543
        %599 = vmatpush1.msra.mxu0 %v542
        %600 = vmatprep.subr.mxu0 0.0
        %601 = vmatpush1.msra.mxu0 0.0
        %602 = vmatprep.subr.mxu0 0.0
        %603 = vmatpush1.msra.mxu0 0.0
        %604 = vmatprep.subr.mxu0 0.0
        %605 = vmatpush1.msra.mxu0 0.0
        %606 = vmatprep.subr.mxu0 0.0
        %607 = vmatpush1.msra.mxu0 0.0
        %608 = vmatprep.subr.mxu0 0.0
        %609 = vmatpush1.msra.mxu0 0.0
        %610 = vmatprep.subr.mxu0 0.0
        %611 = vmatpush1.msra.mxu0 0.0
        %612 = vmatprep.subr.mxu0 0.0
        %613 = vmatpush1.msra.mxu0 0.0
        %614 = vmatprep.subr.mxu0 0.0
        %615 = vmatpush1.msra.mxu0 0.0
        %616 = vmatprep.subr.mxu0 0.0
        %617 = vmatpush1.msra.mxu0 0.0
        %618 = vmatprep.subr.mxu0 0.0
        %619 = vmatpush1.msra.mxu0 0.0
        %620 = vmatprep.subr.mxu0 0.0
        %621 = vmatpush1.msra.mxu0 0.0
        %622 = vmatprep.subr.mxu0 0.0
        %623 = vmatpush1.msra.mxu0 0.0
        %624 = vmatprep.subr.mxu0 0.0
        %625 = vmatpush1.msra.mxu0 0.0
        %626 = vmatprep.subr.mxu0 0.0
        %627 = vmatpush1.msra.mxu0 0.0
        %628 = vmatprep.subr.mxu0 0.0
        %629 = vmatpush1.msra.mxu0 0.0
        %630 = vmatprep.subr.mxu0 0.0
        %631 = vmatpush1.msra.mxu0 0.0
        %632 = vmatprep.mubr.f32.mxu0 0.0
        %633 = vmatmul.mubr.f32.gmra.mrb[0].mxu0 %v387
        %v634 = vpop.f32.mrb[0].mxu0
        %v635 = vadd.f32 %v551, %v634
        %v636 = vpop.f32.mrb[0].mxu0
        %v637 = vadd.f32 %v555, %v636
        %638 = vdwg.mxu0
        %639 = vmatprep.subr.mxu0 %v485
        %640 = vmatpush1.msra.mxu0 %v484
        %641 = vmatprep.subr.mxu0 %v489
        %642 = vmatpush1.msra.mxu0 %v488
        %643 = vmatprep.subr.mxu0 %v493
        %644 = vmatpush1.msra.mxu0 %v492
        %645 = vmatprep.subr.mxu0 %v497
        %646 = vmatpush1.msra.mxu0 %v496
        %647 = vmatprep.subr.mxu0 %v501
        %648 = vmatpush1.msra.mxu0 %v500
        %649 = vmatprep.subr.mxu0 %v505
        %650 = vmatpush1.msra.mxu0 %v504
        %651 = vmatprep.subr.mxu0 %v509
        %652 = vmatpush1.msra.mxu0 %v508
        %653 = vmatprep.subr.mxu0 %v513
        %654 = vmatpush1.msra.mxu0 %v512
        %655 = vmatprep.subr.mxu0 %v517
        %656 = vmatpush1.msra.mxu0 %v516
        %657 = vmatprep.subr.mxu0 %v521
        %658 = vmatpush1.msra.mxu0 %v520
        %659 = vmatprep.subr.mxu0 %v525
        %660 = vmatpush1.msra.mxu0 %v524
        %661 = vmatprep.subr.mxu0 %v529
        %662 = vmatpush1.msra.mxu0 %v528
        %663 = vmatprep.subr.mxu0 %v533
        %664 = vmatpush1.msra.mxu0 %v532
        %665 = vmatprep.subr.mxu0 %v537
        %666 = vmatpush1.msra.mxu0 %v536
        %667 = vmatprep.subr.mxu0 %v541
        %668 = vmatpush1.msra.mxu0 %v540
        %669 = vmatprep.subr.mxu0 %v545
        %670 = vmatpush1.msra.mxu0 %v544
        %671 = vmatprep.subr.mxu0 0.0
        %672 = vmatpush1.msra.mxu0 0.0
        %673 = vmatprep.subr.mxu0 0.0
        %674 = vmatpush1.msra.mxu0 0.0
        %675 = vmatprep.subr.mxu0 0.0
        %676 = vmatpush1.msra.mxu0 0.0
        %677 = vmatprep.subr.mxu0 0.0
        %678 = vmatpush1.msra.mxu0 0.0
        %679 = vmatprep.subr.mxu0 0.0
        %680 = vmatpush1.msra.mxu0 0.0
        %681 = vmatprep.subr.mxu0 0.0
        %682 = vmatpush1.msra.mxu0 0.0
        %683 = vmatprep.subr.mxu0 0.0
        %684 = vmatpush1.msra.mxu0 0.0
        %685 = vmatprep.subr.mxu0 0.0
        %686 = vmatpush1.msra.mxu0 0.0
        %687 = vmatprep.subr.mxu0 0.0
        %688 = vmatpush1.msra.mxu0 0.0
        %689 = vmatprep.subr.mxu0 0.0
        %690 = vmatpush1.msra.mxu0 0.0
        %691 = vmatprep.subr.mxu0 0.0
        %692 = vmatpush1.msra.mxu0 0.0
        %693 = vmatprep.subr.mxu0 0.0
        %694 = vmatpush1.msra.mxu0 0.0
        %695 = vmatprep.subr.mxu0 0.0
        %696 = vmatpush1.msra.mxu0 0.0
        %697 = vmatprep.subr.mxu0 0.0
        %698 = vmatpush1.msra.mxu0 0.0
        %699 = vmatprep.subr.mxu0 0.0
        %700 = vmatpush1.msra.mxu0 0.0
        %701 = vmatprep.subr.mxu0 0.0
        %702 = vmatpush1.msra.mxu0 0.0
        %703 = vmatprep.mubr.f32.mxu0 0.0
        %704 = vmatmul.mubr.f32.gmra.mrb[0].mxu0 %v387
        %v705 = vpop.f32.mrb[0].mxu0
        %v706 = vadd.f32 %v559, %v705
        %v707 = vpop.f32.mrb[0].mxu0
        %v708 = vadd.f32 %v563, %v707
        %709 = vdwg.mxu0
        %v710 = vld [vmem:[#allocation5] sm:$0xff]
        %v711 = vld [vmem:[#allocation5 + $0x8] sm:$0xff]
        %v712 = vld [vmem:[#allocation5 + $0x10] sm:$0xff]
        %v713 = vld [vmem:[#allocation5 + $0x18] sm:$0xff]
        %v714 = vld [vmem:[#allocation5 + $0x20] sm:$0xff]
        %v715 = vld [vmem:[#allocation5 + $0x28] sm:$0xff]
        %v716 = vld [vmem:[#allocation5 + $0x30] sm:$0xff]
        %v717 = vld [vmem:[#allocation5 + $0x38] sm:$0xff]
        %v718 = vld [vmem:[#allocation5 + $0x40] sm:$0xff]
        %v719 = vld [vmem:[#allocation5 + $0x48] sm:$0xff]
        %v720 = vld [vmem:[#allocation5 + $0x50] sm:$0xff]
        %v721 = vld [vmem:[#allocation5 + $0x58] sm:$0xff]
        %v722 = vld [vmem:[#allocation5 + $0x60] sm:$0xff]
        %v723 = vld [vmem:[#allocation5 + $0x68] sm:$0xff]
        %v724 = vld [vmem:[#allocation5 + $0x70] sm:$0xff]
        %v725 = vld [vmem:[#allocation5 + $0x78] sm:$0xff]
        %v726 = vld [vmem:[#allocation5 + $0x80] sm:$0xff]
        %v727 = vld [vmem:[#allocation5 + $0x88] sm:$0xff]
        %v728 = vld [vmem:[#allocation5 + $0x90] sm:$0xff]
        %v729 = vld [vmem:[#allocation5 + $0x98] sm:$0xff]
        %v730 = vld [vmem:[#allocation5 + $0xa0] sm:$0xff]
        %v731 = vld [vmem:[#allocation5 + $0xa8] sm:$0xff]
        %v732 = vld [vmem:[#allocation5 + $0xb0] sm:$0xff]
        %v733 = vld [vmem:[#allocation5 + $0xb8] sm:$0xff]
        %v734 = vld [vmem:[#allocation5 + $0xc0] sm:$0xff]
        %v735 = vld [vmem:[#allocation5 + $0xc8] sm:$0xff]
        %v736 = vld [vmem:[#allocation5 + $0xd0] sm:$0xff]
        %v737 = vld [vmem:[#allocation5 + $0xd8] sm:$0xff]
        %v738 = vld [vmem:[#allocation5 + $0xe0] sm:$0xff]
        %v739 = vld [vmem:[#allocation5 + $0xe8] sm:$0xff]
        %v740 = vld [vmem:[#allocation5 + $0xf0] sm:$0xff]
        %v741 = vld [vmem:[#allocation5 + $0xf8] sm:$0xff]
        %v742 = vld [vmem:[#allocation5 + $0x100] sm:$0xff]
        %v743 = vld [vmem:[#allocation5 + $0x108] sm:$0xff]
        %v744 = vld [vmem:[#allocation5 + $0x110] sm:$0xff]
        %v745 = vld [vmem:[#allocation5 + $0x118] sm:$0xff]
        %v746 = vld [vmem:[#allocation5 + $0x120] sm:$0xff]
        %v747 = vld [vmem:[#allocation5 + $0x128] sm:$0xff]
        %v748 = vld [vmem:[#allocation5 + $0x130] sm:$0xff]
        %v749 = vld [vmem:[#allocation5 + $0x138] sm:$0xff]
        %v750 = vld [vmem:[#allocation5 + $0x140] sm:$0xff]
        %v751 = vld [vmem:[#allocation5 + $0x148] sm:$0xff]
        %v752 = vld [vmem:[#allocation5 + $0x150] sm:$0xff]
        %v753 = vld [vmem:[#allocation5 + $0x158] sm:$0xff]
        %v754 = vld [vmem:[#allocation5 + $0x160] sm:$0xff]
        %v755 = vld [vmem:[#allocation5 + $0x168] sm:$0xff]
        %v756 = vld [vmem:[#allocation5 + $0x170] sm:$0xff]
        %v757 = vld [vmem:[#allocation5 + $0x178] sm:$0xff]
        %758 = vmatprep.subr.mxu0 %v711
        %759 = vmatpush1.msra.mxu0 %v710
        %760 = vmatprep.subr.mxu0 %v714
        %761 = vmatpush1.msra.mxu0 %v713
        %762 = vmatprep.subr.mxu0 %v717
        %763 = vmatpush1.msra.mxu0 %v716
        %764 = vmatprep.subr.mxu0 %v720
        %765 = vmatpush1.msra.mxu0 %v719
        %766 = vmatprep.subr.mxu0 %v723
        %767 = vmatpush1.msra.mxu0 %v722
        %768 = vmatprep.subr.mxu0 %v726
        %769 = vmatpush1.msra.mxu0 %v725
        %770 = vmatprep.subr.mxu0 %v729
        %771 = vmatpush1.msra.mxu0 %v728
        %772 = vmatprep.subr.mxu0 %v732
        %773 = vmatpush1.msra.mxu0 %v731
        %774 = vmatprep.subr.mxu0 %v735
        %775 = vmatpush1.msra.mxu0 %v734
        %776 = vmatprep.subr.mxu0 %v738
        %777 = vmatpush1.msra.mxu0 %v737
        %778 = vmatprep.subr.mxu0 %v741
        %779 = vmatpush1.msra.mxu0 %v740
        %780 = vmatprep.subr.mxu0 %v744
        %781 = vmatpush1.msra.mxu0 %v743
        %782 = vmatprep.subr.mxu0 %v747
        %783 = vmatpush1.msra.mxu0 %v746
        %784 = vmatprep.subr.mxu0 %v750
        %785 = vmatpush1.msra.mxu0 %v749
        %786 = vmatprep.subr.mxu0 %v753
        %787 = vmatpush1.msra.mxu0 %v752
        %788 = vmatprep.subr.mxu0 %v756
        %789 = vmatpush1.msra.mxu0 %v755
        %790 = vmatprep.subr.mxu0 0.0
        %791 = vmatpush1.msra.mxu0 0.0
        %792 = vmatprep.subr.mxu0 0.0
        %793 = vmatpush1.msra.mxu0 0.0
        %794 = vmatprep.subr.mxu0 0.0
        %795 = vmatpush1.msra.mxu0 0.0
        %796 = vmatprep.subr.mxu0 0.0
        %797 = vmatpush1.msra.mxu0 0.0
        %798 = vmatprep.subr.mxu0 0.0
        %799 = vmatpush1.msra.mxu0 0.0
        %800 = vmatprep.subr.mxu0 0.0
        %801 = vmatpush1.msra.mxu0 0.0
        %802 = vmatprep.subr.mxu0 0.0
        %803 = vmatpush1.msra.mxu0 0.0
        %804 = vmatprep.subr.mxu0 0.0
        %805 = vmatpush1.msra.mxu0 0.0
        %806 = vmatprep.subr.mxu0 0.0
        %807 = vmatpush1.msra.mxu0 0.0
        %808 = vmatprep.subr.mxu0 0.0
        %809 = vmatpush1.msra.mxu0 0.0
        %810 = vmatprep.subr.mxu0 0.0
        %811 = vmatpush1.msra.mxu0 0.0
        %812 = vmatprep.subr.mxu0 0.0
        %813 = vmatpush1.msra.mxu0 0.0
        %814 = vmatprep.subr.mxu0 0.0
        %815 = vmatpush1.msra.mxu0 0.0
        %816 = vmatprep.subr.mxu0 0.0
        %817 = vmatpush1.msra.mxu0 0.0
        %818 = vmatprep.subr.mxu0 0.0
        %819 = vmatpush1.msra.mxu0 0.0
        %820 = vmatprep.subr.mxu0 0.0
        %821 = vmatpush1.msra.mxu0 0.0
        %822 = vmatprep.mubr.f32.mxu0 0.0
        %823 = vmatmul.mubr.f32.gmra.mrb[0].mxu0 %v481
        %v824 = vpop.f32.mrb[0].mxu0
        %v825 = vadd.f32 0.0, %v824
        %v826 = vpop.f32.mrb[0].mxu0
        %v827 = vadd.f32 0.0, %v826
        %828 = vdwg.mxu0
        %829 = vmatprep.subr.mxu0 0.0
        %830 = vmatpush1.msra.mxu0 %v712
        %831 = vmatprep.subr.mxu0 0.0
        %832 = vmatpush1.msra.mxu0 %v715
        %833 = vmatprep.subr.mxu0 0.0
        %834 = vmatpush1.msra.mxu0 %v718
        %835 = vmatprep.subr.mxu0 0.0
        %836 = vmatpush1.msra.mxu0 %v721
        %837 = vmatprep.subr.mxu0 0.0
        %838 = vmatpush1.msra.mxu0 %v724
        %839 = vmatprep.subr.mxu0 0.0
        %840 = vmatpush1.msra.mxu0 %v727
        %841 = vmatprep.subr.mxu0 0.0
        %842 = vmatpush1.msra.mxu0 %v730
        %843 = vmatprep.subr.mxu0 0.0
        %844 = vmatpush1.msra.mxu0 %v733
        %845 = vmatprep.subr.mxu0 0.0
        %846 = vmatpush1.msra.mxu0 %v736
        %847 = vmatprep.subr.mxu0 0.0
        %848 = vmatpush1.msra.mxu0 %v739
        %849 = vmatprep.subr.mxu0 0.0
        %850 = vmatpush1.msra.mxu0 %v742
        %851 = vmatprep.subr.mxu0 0.0
        %852 = vmatpush1.msra.mxu0 %v745
        %853 = vmatprep.subr.mxu0 0.0
        %854 = vmatpush1.msra.mxu0 %v748
        %855 = vmatprep.subr.mxu0 0.0
        %856 = vmatpush1.msra.mxu0 %v751
        %857 = vmatprep.subr.mxu0 0.0
        %858 = vmatpush1.msra.mxu0 %v754
        %859 = vmatprep.subr.mxu0 0.0
        %860 = vmatpush1.msra.mxu0 %v757
        %861 = vmatprep.subr.mxu0 0.0
        %862 = vmatpush1.msra.mxu0 0.0
        %863 = vmatprep.subr.mxu0 0.0
        %864 = vmatpush1.msra.mxu0 0.0
        %865 = vmatprep.subr.mxu0 0.0
        %866 = vmatpush1.msra.mxu0 0.0
        %867 = vmatprep.subr.mxu0 0.0
        %868 = vmatpush1.msra.mxu0 0.0
        %869 = vmatprep.subr.mxu0 0.0
        %870 = vmatpush1.msra.mxu0 0.0
        %871 = vmatprep.subr.mxu0 0.0
        %872 = vmatpush1.msra.mxu0 0.0
        %873 = vmatprep.subr.mxu0 0.0
        %874 = vmatpush1.msra.mxu0 0.0
        %875 = vmatprep.subr.mxu0 0.0
        %876 = vmatpush1.msra.mxu0 0.0
        %877 = vmatprep.subr.mxu0 0.0
        %878 = vmatpush1.msra.mxu0 0.0
        %879 = vmatprep.subr.mxu0 0.0
        %880 = vmatpush1.msra.mxu0 0.0
        %881 = vmatprep.subr.mxu0 0.0
        %882 = vmatpush1.msra.mxu0 0.0
        %883 = vmatprep.subr.mxu0 0.0
        %884 = vmatpush1.msra.mxu0 0.0
        %885 = vmatprep.subr.mxu0 0.0
        %886 = vmatpush1.msra.mxu0 0.0
        %887 = vmatprep.subr.mxu0 0.0
        %888 = vmatpush1.msra.mxu0 0.0
        %889 = vmatprep.subr.mxu0 0.0
        %890 = vmatpush1.msra.mxu0 0.0
        %891 = vmatprep.subr.mxu0 0.0
        %892 = vmatpush1.msra.mxu0 0.0
        %893 = vmatprep.mubr.f32.mxu0 0.0
        %894 = vmatmul.mubr.f32.gmra.mrb[0].mxu0 %v481
        %v895 = vpop.f32.mrb[0].mxu0
        %v896 = vadd.f32 0.0, %v895
        %v897 = vpop.f32.mrb[0].mxu0
        %898 = vdwg.mxu0
        %v899 = vadd.f32 %v635, %v825
        %v900 = vxor.u32 %v899, 2147483648
        %v901 = vmul.f32 %v900, 1.442695
        %v902 = vpow.pop %v901
        %v903 = vadd.f32 %v902, 1.0
        %v904 = vrcp.pop %v903
        %v905 = vmul.f32 1.0, %v904
        %v906 = vadd.f32 %v637, %v827
        %v907 = vxor.u32 %v906, 2147483648
        %v908 = vmul.f32 %v907, 1.442695
        %v909 = vpow.pop %v908
        %v910 = vadd.f32 %v909, 1.0
        %v911 = vrcp.pop %v910
        %v912 = vmul.f32 1.0, %v911
        %v913 = vadd.f32 %v706, %v896
        %v914 = vtanh.pop %v913
        %v915 = vld [vmem:[#allocation7] sm:$0xff]
        %v916 = vld [vmem:[#allocation7 + $0x8] sm:$0xff]
        %v917 = vld [vmem:[#allocation7 + $0x10] sm:$0xff]
        %v918 = vld [vmem:[#allocation7 + $0x18] sm:$0xff]
        %v919 = vld [vmem:[#allocation7 + $0x20] sm:$0xff]
        %v920 = vld [vmem:[#allocation7 + $0x28] sm:$0xff]
        %v921 = vld [vmem:[#allocation7 + $0x30] sm:$0xff]
        %v922 = vld [vmem:[#allocation7 + $0x38] sm:$0xff]
        %v923 = vld [vmem:[#allocation7 + $0x40] sm:$0xff]
        %v924 = vld [vmem:[#allocation7 + $0x48] sm:$0xff]
        %v925 = vld [vmem:[#allocation7 + $0x50] sm:$0xff]
        %v926 = vld [vmem:[#allocation7 + $0x58] sm:$0xff]
        %v927 = vld [vmem:[#allocation7 + $0x60] sm:$0xff]
        %v928 = vld [vmem:[#allocation7 + $0x68] sm:$0xff]
        %v929 = vld [vmem:[#allocation7 + $0x70] sm:$0xff]
        %v930 = vld [vmem:[#allocation7 + $0x78] sm:$0xff]
        %931 = vmatprep.subr.mxu0 0.0
        %932 = vmatpush1.msra.mxu0 %v915
        %933 = vmatprep.subr.mxu0 0.0
        %934 = vmatpush1.msra.mxu0 %v916
        %935 = vmatprep.subr.mxu0 0.0
        %936 = vmatpush1.msra.mxu0 %v917
        %937 = vmatprep.subr.mxu0 0.0
        %938 = vmatpush1.msra.mxu0 %v918
        %939 = vmatprep.subr.mxu0 0.0
        %940 = vmatpush1.msra.mxu0 %v919
        %941 = vmatprep.subr.mxu0 0.0
        %942 = vmatpush1.msra.mxu0 %v920
        %943 = vmatprep.subr.mxu0 0.0
        %944 = vmatpush1.msra.mxu0 %v921
        %945 = vmatprep.subr.mxu0 0.0
        %946 = vmatpush1.msra.mxu0 %v922
        %947 = vmatprep.subr.mxu0 0.0
        %948 = vmatpush1.msra.mxu0 %v923
        %949 = vmatprep.subr.mxu0 0.0
        %950 = vmatpush1.msra.mxu0 %v924
        %951 = vmatprep.subr.mxu0 0.0
        %952 = vmatpush1.msra.mxu0 %v925
        %953 = vmatprep.subr.mxu0 0.0
        %954 = vmatpush1.msra.mxu0 %v926
        %955 = vmatprep.subr.mxu0 0.0
        %956 = vmatpush1.msra.mxu0 %v927
        %957 = vmatprep.subr.mxu0 0.0
        %958 = vmatpush1.msra.mxu0 %v928
        %959 = vmatprep.subr.mxu0 0.0
        %960 = vmatpush1.msra.mxu0 %v929
        %961 = vmatprep.subr.mxu0 0.0
        %962 = vmatpush1.msra.mxu0 %v930
        %963 = vmatprep.subr.mxu0 0.0
        %964 = vmatpush1.msra.mxu0 0.0
        %965 = vmatprep.subr.mxu0 0.0
        %966 = vmatpush1.msra.mxu0 0.0
        %967 = vmatprep.subr.mxu0 0.0
        %968 = vmatpush1.msra.mxu0 0.0
        %969 = vmatprep.subr.mxu0 0.0
        %970 = vmatpush1.msra.mxu0 0.0
        %971 = vmatprep.subr.mxu0 0.0
        %972 = vmatpush1.msra.mxu0 0.0
        %973 = vmatprep.subr.mxu0 0.0
        %974 = vmatpush1.msra.mxu0 0.0
        %975 = vmatprep.subr.mxu0 0.0
        %976 = vmatpush1.msra.mxu0 0.0
        %977 = vmatprep.subr.mxu0 0.0
        %978 = vmatpush1.msra.mxu0 0.0
        %979 = vmatprep.subr.mxu0 0.0
        %980 = vmatpush1.msra.mxu0 0.0
        %981 = vmatprep.subr.mxu0 0.0
        %982 = vmatpush1.msra.mxu0 0.0
        %983 = vmatprep.subr.mxu0 0.0
        %984 = vmatpush1.msra.mxu0 0.0
        %985 = vmatprep.subr.mxu0 0.0
        %986 = vmatpush1.msra.mxu0 0.0
        %987 = vmatprep.subr.mxu0 0.0
        %988 = vmatpush1.msra.mxu0 0.0
        %989 = vmatprep.subr.mxu0 0.0
        %990 = vmatpush1.msra.mxu0 0.0
        %991 = vmatprep.subr.mxu0 0.0
        %992 = vmatpush1.msra.mxu0 0.0
        %993 = vmatprep.subr.mxu0 0.0
        %994 = vmatpush1.msra.mxu0 0.0
        %995 = vmatprep.mubr.f32.mxu0 0.0
        %996 = vmatmul.mubr.f32.gmra.mrb[0].mxu0 %v473
        %v997 = vpop.f32.mrb[0].mxu0
        %v998 = vadd.f32 0.0, %v997
        %v999 = vpop.f32.mrb[0].mxu0
        %1000 = vmatprep.mubr.f32.mxu0 0.0
        %1001 = vmatmul.mubr.f32.gmra.mrb[0].mxu0 %v478
        %v1002 = vpop.f32.mrb[0].mxu0
        %v1003 = vadd.f32 0.0, %v1002
        %v1004 = vpop.f32.mrb[0].mxu0
        %1005 = vdwg.mxu0
        %v1006 = vadd.f32 %v998, %v708
        %v1007 = vxor.u32 %v1006, 2147483648
        %v1008 = vmul.f32 %v1007, 1.442695
        %v1009 = vpow.pop %v1008
        %v1010 = vadd.f32 %v1009, 1.0
        %v1011 = vrcp.pop %v1010
        %v1012 = vmul.f32 1.0, %v1011
        %v1013 = vmul.f32 %v1012, %v473
        %v1014 = vadd.f32 %v1013, 0.0
        %v1015 = vadd.f32 %v1003, %v708
        %v1016 = vxor.u32 %v1015, 2147483648
        %v1017 = vmul.f32 %v1016, 1.442695
        %v1018 = vpow.pop %v1017
        %v1019 = vadd.f32 %v1018, 1.0
        %v1020 = vrcp.pop %v1019
        %v1021 = vmul.f32 1.0, %v1020
        %v1022 = vmul.f32 %v1021, %v478
        %v1023 = vadd.f32 %v1014, %v1022
        %v1024 = vmul.f32 %v905, %v914
        %v1025 = vadd.f32 %v1024, %v1023
        %v1026 = vtanh.pop %v1025
        %v1027 = vmul.f32 %v912, %v1026
        %vm1028 = vcmask 64512
        %v1030 = vsel %vm1028, %v390, 0
        %v1033 = vsel %vm1028, %v391, 0
        %v1036 = vsel %vm1028, %v392, 0
        %v1039 = vsel %vm1028, %v393, 0
        %v1042 = vsel %vm1028, %v394, 0
        %v1045 = vsel %vm1028, %v395, 0
        %v1048 = vsel %vm1028, %v396, 0
        %v1051 = vsel %vm1028, %v397, 0
        %v1054 = vsel %vm1028, %v398, 0
        %v1057 = vsel %vm1028, %v399, 0
        %v1060 = vsel %vm1028, %v400, 0
        %v1063 = vsel %vm1028, %v401, 0
        %v1066 = vsel %vm1028, %v402, 0
        %v1069 = vsel %vm1028, %v403, 0
        %v1072 = vsel %vm1028, %v404, 0
        %v1075 = vsel %vm1028, %v405, 0
        %1077 = vmatprep.subr.mxu0 0.0
        %1078 = vmatpush1.msra.mxu0 %v1027
        %1079 = vmatprep.subr.mxu0 0.0
        %1080 = vmatpush1.msra.mxu0 0.0
        %1081 = vmatprep.subr.mxu0 0.0
        %1082 = vmatpush1.msra.mxu0 0.0
        %1083 = vmatprep.subr.mxu0 0.0
        %1084 = vmatpush1.msra.mxu0 0.0
        %1085 = vmatprep.subr.mxu0 0.0
        %1086 = vmatpush1.msra.mxu0 0.0
        %1087 = vmatprep.subr.mxu0 0.0
        %1088 = vmatpush1.msra.mxu0 0.0
        %1089 = vmatprep.subr.mxu0 0.0
        %1090 = vmatpush1.msra.mxu0 0.0
        %1091 = vmatprep.subr.mxu0 0.0
        %1092 = vmatpush1.msra.mxu0 0.0
        %1093 = vmatprep.subr.mxu0 0.0
        %1094 = vmatpush1.msra.mxu0 0.0
        %1095 = vmatprep.subr.mxu0 0.0
        %1096 = vmatpush1.msra.mxu0 0.0
        %1097 = vmatprep.subr.mxu0 0.0
        %1098 = vmatpush1.msra.mxu0 0.0
        %1099 = vmatprep.subr.mxu0 0.0
        %1100 = vmatpush1.msra.mxu0 0.0
        %1101 = vmatprep.subr.mxu0 0.0
        %1102 = vmatpush1.msra.mxu0 0.0
        %1103 = vmatprep.subr.mxu0 0.0
        %1104 = vmatpush1.msra.mxu0 0.0
        %1105 = vmatprep.subr.mxu0 0.0
        %1106 = vmatpush1.msra.mxu0 0.0
        %1107 = vmatprep.subr.mxu0 0.0
        %1108 = vmatpush1.msra.mxu0 0.0
        %1109 = vmatprep.subr.mxu0 0.0
        %1110 = vmatpush1.msra.mxu0 0.0
        %1111 = vmatprep.subr.mxu0 0.0
        %1112 = vmatpush1.msra.mxu0 0.0
        %1113 = vmatprep.subr.mxu0 0.0
        %1114 = vmatpush1.msra.mxu0 0.0
        %1115 = vmatprep.subr.mxu0 0.0
        %1116 = vmatpush1.msra.mxu0 0.0
        %1117 = vmatprep.subr.mxu0 0.0
        %1118 = vmatpush1.msra.mxu0 0.0
        %1119 = vmatprep.subr.mxu0 0.0
        %1120 = vmatpush1.msra.mxu0 0.0
        %1121 = vmatprep.subr.mxu0 0.0
        %1122 = vmatpush1.msra.mxu0 0.0
        %1123 = vmatprep.subr.mxu0 0.0
        %1124 = vmatpush1.msra.mxu0 0.0
        %1125 = vmatprep.subr.mxu0 0.0
        %1126 = vmatpush1.msra.mxu0 0.0
        %1127 = vmatprep.subr.mxu0 0.0
        %1128 = vmatpush1.msra.mxu0 0.0
        %1129 = vmatprep.subr.mxu0 0.0
        %1130 = vmatpush1.msra.mxu0 0.0
        %1131 = vmatprep.subr.mxu0 0.0
        %1132 = vmatpush1.msra.mxu0 0.0
        %1133 = vmatprep.subr.mxu0 0.0
        %1134 = vmatpush1.msra.mxu0 0.0
        %1135 = vmatprep.subr.mxu0 0.0
        %1136 = vmatpush1.msra.mxu0 0.0
        %1137 = vmatprep.subr.mxu0 0.0
        %1138 = vmatpush1.msra.mxu0 0.0
        %1139 = vmatprep.subr.mxu0 0.0
        %1140 = vmatpush1.msra.mxu0 0.0
        %1141 = vmatprep.mubr.f32.mxu0 0.0
        %1142 = vmatmul.mubr.f32.gmra.mrb[0].mxu0 %v1030
        %v1143 = vpop.f32.mrb[0].mxu0
        %v1144 = vadd.f32 0.0, %v1143
        %v1145 = vpop.f32.mrb[0].mxu0
        %1146 = vmatprep.mubr.f32.mxu0 0.0
        %1147 = vmatmul.mubr.f32.gmra.mrb[0].mxu0 %v1033
        %v1148 = vpop.f32.mrb[0].mxu0
        %v1149 = vadd.f32 0.0, %v1148
        %v1150 = vpop.f32.mrb[0].mxu0
        %1151 = vmatprep.mubr.f32.mxu0 0.0
        %1152 = vmatmul.mubr.f32.gmra.mrb[0].mxu0 %v1036
        %v1153 = vpop.f32.mrb[0].mxu0
        %v1154 = vadd.f32 0.0, %v1153
        %v1155 = vpop.f32.mrb[0].mxu0
        %1156 = vmatprep.mubr.f32.mxu0 0.0
        %1157 = vmatmul.mubr.f32.gmra.mrb[0].mxu0 %v1039
        %v1158 = vpop.f32.mrb[0].mxu0
        %v1159 = vadd.f32 0.0, %v1158
        %v1160 = vpop.f32.mrb[0].mxu0
        %1161 = vmatprep.mubr.f32.mxu0 0.0
        %1162 = vmatmul.mubr.f32.gmra.mrb[0].mxu0 %v1042
        %v1163 = vpop.f32.mrb[0].mxu0
        %v1164 = vadd.f32 0.0, %v1163
        %v1165 = vpop.f32.mrb[0].mxu0
        %1166 = vmatprep.mubr.f32.mxu0 0.0
        %1167 = vmatmul.mubr.f32.gmra.mrb[0].mxu0 %v1045
        %v1168 = vpop.f32.mrb[0].mxu0
        %v1169 = vadd.f32 0.0, %v1168
        %v1170 = vpop.f32.mrb[0].mxu0
        %1171 = vmatprep.mubr.f32.mxu0 0.0
        %1172 = vmatmul.mubr.f32.gmra.mrb[0].mxu0 %v1048
        %v1173 = vpop.f32.mrb[0].mxu0
        %v1174 = vadd.f32 0.0, %v1173
        %v1175 = vpop.f32.mrb[0].mxu0
        %1176 = vmatprep.mubr.f32.mxu0 0.0
        %1177 = vmatmul.mubr.f32.gmra.mrb[0].mxu0 %v1051
        %v1178 = vpop.f32.mrb[0].mxu0
        %v1179 = vadd.f32 0.0, %v1178
        %v1180 = vpop.f32.mrb[0].mxu0
        %1181 = vmatprep.mubr.f32.mxu0 0.0
        %1182 = vmatmul.mubr.f32.gmra.mrb[0].mxu0 %v1054
        %v1183 = vpop.f32.mrb[0].mxu0
        %v1184 = vadd.f32 0.0, %v1183
        %v1185 = vpop.f32.mrb[0].mxu0
        %1186 = vmatprep.mubr.f32.mxu0 0.0
        %1187 = vmatmul.mubr.f32.gmra.mrb[0].mxu0 %v1057
        %v1188 = vpop.f32.mrb[0].mxu0
        %v1189 = vadd.f32 0.0, %v1188
        %v1190 = vpop.f32.mrb[0].mxu0
        %1191 = vmatprep.mubr.f32.mxu0 0.0
        %1192 = vmatmul.mubr.f32.gmra.mrb[0].mxu0 %v1060
        %v1193 = vpop.f32.mrb[0].mxu0
        %v1194 = vadd.f32 0.0, %v1193
        %v1195 = vpop.f32.mrb[0].mxu0
        %1196 = vmatprep.mubr.f32.mxu0 0.0
        %1197 = vmatmul.mubr.f32.gmra.mrb[0].mxu0 %v1063
        %v1198 = vpop.f32.mrb[0].mxu0
        %v1199 = vadd.f32 0.0, %v1198
        %v1200 = vpop.f32.mrb[0].mxu0
        %1201 = vmatprep.mubr.f32.mxu0 0.0
        %1202 = vmatmul.mubr.f32.gmra.mrb[0].mxu0 %v1066
        %v1203 = vpop.f32.mrb[0].mxu0
        %v1204 = vadd.f32 0.0, %v1203
        %v1205 = vpop.f32.mrb[0].mxu0
        %1206 = vmatprep.mubr.f32.mxu0 0.0
        %1207 = vmatmul.mubr.f32.gmra.mrb[0].mxu0 %v1069
        %v1208 = vpop.f32.mrb[0].mxu0
        %v1209 = vadd.f32 0.0, %v1208
        %v1210 = vpop.f32.mrb[0].mxu0
        %1211 = vmatprep.mubr.f32.mxu0 0.0
        %1212 = vmatmul.mubr.f32.gmra.mrb[0].mxu0 %v1072
        %v1213 = vpop.f32.mrb[0].mxu0
        %v1214 = vadd.f32 0.0, %v1213
        %v1215 = vpop.f32.mrb[0].mxu0
        %1216 = vmatprep.mubr.f32.mxu0 0.0
        %1217 = vmatmul.mubr.f32.gmra.mrb[0].mxu0 %v1075
        %v1218 = vpop.f32.mrb[0].mxu0
        %v1219 = vadd.f32 0.0, %v1218
        %v1220 = vpop.f32.mrb[0].mxu0
        %1221 = vdwg.mxu0
        %v1222 = vadd.f32 %v371, %v1144
        %v1223 = vadd.f32 %v372, %v1149
        %v1224 = vadd.f32 %v373, %v1154
        %v1225 = vadd.f32 %v374, %v1159
        %v1226 = vadd.f32 %v375, %v1164
        %v1227 = vadd.f32 %v376, %v1169
        %v1228 = vadd.f32 %v377, %v1174
        %v1229 = vadd.f32 %v378, %v1179
        %v1230 = vadd.f32 %v379, %v1184
        %v1231 = vadd.f32 %v380, %v1189
        %v1232 = vadd.f32 %v381, %v1194
        %v1233 = vadd.f32 %v382, %v1199
        %v1234 = vadd.f32 %v383, %v1204
        %v1235 = vadd.f32 %v384, %v1209
        %v1236 = vadd.f32 %v385, %v1214
        %v1237 = vadd.f32 %v386, %v1219
        %1238 = vst [vmem:[#allocation8] sm:$0xff] %v1222
        %1239 = vst [vmem:[#allocation8 + $0x8] sm:$0xff] %v1223
        %1240 = vst [vmem:[#allocation8 + $0x10] sm:$0xff] %v1224
        %1241 = vst [vmem:[#allocation8 + $0x18] sm:$0xff] %v1225
        %1242 = vst [vmem:[#allocation8 + $0x20] sm:$0xff] %v1226
        %1243 = vst [vmem:[#allocation8 + $0x28] sm:$0xff] %v1227
        %1244 = vst [vmem:[#allocation8 + $0x30] sm:$0xff] %v1228
        %1245 = vst [vmem:[#allocation8 + $0x38] sm:$0xff] %v1229
        %1246 = vst [vmem:[#allocation8 + $0x40] sm:$0xff] %v1230
        %1247 = vst [vmem:[#allocation8 + $0x48] sm:$0xff] %v1231
        %1248 = vst [vmem:[#allocation8 + $0x50] sm:$0xff] %v1232
        %1249 = vst [vmem:[#allocation8 + $0x58] sm:$0xff] %v1233
        %1250 = vst [vmem:[#allocation8 + $0x60] sm:$0xff] %v1234
        %1251 = vst [vmem:[#allocation8 + $0x68] sm:$0xff] %v1235
        %1252 = vst [vmem:[#allocation8 + $0x70] sm:$0xff] %v1236
        %1253 = vst [vmem:[#allocation8 + $0x78] sm:$0xff] %v1237
        // Predicated region
        $region65: #{tpu_custom_call.1} parent=47 // pred_check
          %p1254 = pneg %p198
        $region66: #{tpu_custom_call.1} parent=47 // pred_check_branch
          %1256 = sbr.rel (%p1254) target = $region68
        $region67: #{tpu_custom_call.1} parent=47 // pred_region
          %s1258 = ssub.s32 2048, 2048
          %1259 = vsyncadd [#allocation4], %s1258
          %s1260 = sshll.u32 [#allocation8], 4
          %s1261 = int_to_ptr.vmem [resolvable:$true] %s1260
          %1266 = dma.vmem_to_hbm [thread:$0]  %s1261, 2048, %s7, [#allocation4], 128, 128, 8
        $region68: #{tpu_custom_call.1} parent=47 // pred_fallthru
          _
        // Predicated region
        $region69: #{tpu_custom_call.1} parent=47 // pred_check
          %p1267 = pneg %p198
        $region70: #{tpu_custom_call.1} parent=47 // pred_check_branch
          %1269 = sbr.rel (%p1267) target = $region72
        $region71: #{tpu_custom_call.1} parent=47 // pred_region
          %1270 = dma.done [#allocation4], 2048
        $region72: #{tpu_custom_call.1} parent=47 // pred_fallthru
          _
      $region48: #{tpu_custom_call.1} parent=5 // pred_fallthru
        _
      %p1271 = scmp.le.s32.totalorder 2, %s18
      // Predicated region
      $region73: #{tpu_custom_call.1} parent=5 // pred_check
        %p1272 = pneg %p1271
      $region74: #{tpu_custom_call.1} parent=5 // pred_check_branch
        %1274 = sbr.rel (%p1272) target = $region76
      $region75: #{tpu_custom_call.1} parent=5 // pred_region
        %s1275 = ssub.s32 %s18, 2
      $region76: #{tpu_custom_call.1} parent=5 // pred_fallthru
        _
    $region6: #{tpu_custom_call.1} parent=1 // loop_footer
      %s22 = sadd.s32 1, %s18
    $region7: #{tpu_custom_call.1} parent=1 // loop_footer_branch
      %17 = sbr.rel target = $region3
    $region8: #{tpu_custom_call.1} parent=1 // loop_exit
      _
    %1276 = vsyncpa [#allocation3], 1
    %s1277 = scalar_lea.sflag [#allocation3], 1
    %1278 = vsyncpa %s1277, 1
    %1279 = vsyncpa [#allocation6], 1
    %1280 = vsyncpa [#allocation4], 1
    %s1281 = scalar_lea.sflag [#allocation4], 1
    %1282 = vsyncpa %s1281, 1

</llo_original>
